<compile_context>
chip_gen: v6e
topology: v6e:2x2x1
jax: 0.10.0
libtpu: 0.0.40
codegen_flags: <defaults>
</compile_context>

<pallas_src>
import functools

import jax
import jax.numpy as jnp
from jax.experimental import pallas as pl
from jax.experimental.pallas import tpu as pltpu

EPS = 1e-5


def _round_up(x, m):
    return ((x + m - 1) // m) * m


def _layernorm_rowwise_kernel(x, gamma, beta, eps):
    """DDPG LayerNorm: unbiased std (N-1), eps added to std, exact divide."""
    n = x.shape[-1]
    mean = jnp.mean(x, axis=-1, keepdims=True)
    c = x - mean
    var_unbiased = jnp.sum(c * c, axis=-1, keepdims=True) * (1.0 / (n - 1))
    std = jnp.sqrt(var_unbiased)
    return gamma * (c / (std + eps)) + beta


def ddpg_actor_kernel(s_ref, w1_ref, w2_ref, w3_ref, ln_ref, b3_ref, o_ref):
    # Packed LN / bias params, one row each of a (6, H) f32 array:
    #   0: b1, 1: gamma1, 2: beta1, 3: b2, 4: gamma2, 5: beta2
    ln = ln_ref[...]
    b1, g1, be1 = ln[0:1, :], ln[1:2, :], ln[2:3, :]
    b2, g2, be2 = ln[3:4, :], ln[4:5, :], ln[5:6, :]

    # input_layer + LayerNorm + ReLU  (bf16 MXU operands, f32 accumulation;
    # state was pre-cast to bf16 in the wrapper)
    h = jnp.dot(s_ref[...], w1_ref[...],
                preferred_element_type=jnp.float32) + b1
    h = _layernorm_rowwise_kernel(h, g1, be1, EPS)
    h = jnp.maximum(h, 0.0)

    # hidden + LayerNorm + ReLU
    h = jnp.dot(h.astype(jnp.bfloat16), w2_ref[...],
                preferred_element_type=jnp.float32) + b2
    h = _layernorm_rowwise_kernel(h, g2, be2, EPS)
    h = jnp.maximum(h, 0.0)

    # final_layer (zero-padded to a lane-dense width) + Tanh; bf16 store.
    out = jnp.dot(h.astype(jnp.bfloat16), w3_ref[...],
                  preferred_element_type=jnp.float32) + b3_ref[...]
    o_ref[...] = jnp.tanh(out).astype(o_ref.dtype)


@functools.partial(jax.jit, static_argnames=("block_b",))
def ddpg_actor_forward(s, params, *, block_b=512):
    (w1, b1, g1, be1, w2, b2, g2, be2, w3, b3) = params
    B, IN = s.shape
    H = w1.shape[1]
    O = w3.shape[1]

    # Lane-dense final layer: pad output width to a multiple of 128 with zero
    # columns so the kernel's store is an unmasked full-lane vst.
    O_pad = _round_up(O, 128)
    w3p = jnp.zeros((H, O_pad), w3.dtype).at[:, :O].set(w3)
    b3p = jnp.zeros((1, O_pad), b3.dtype).at[0, :O].set(b3)

    # Batch tiling for the parallel grid axis. Large tiles amortize per-step
    # overhead; keep >=2 grid steps when possible so v7x's two TensorCores
    # both get work (v5e/v6e just see a shorter loop).
    TB = min(block_b, _round_up(B, 8))
    if _round_up(B, TB) // TB < 2 and TB > 8:
        TB = _round_up(max(8, (TB + 1) // 2), 8)
    B_pad = _round_up(B, TB)
    if B_pad != B:
        s = jnp.pad(s, ((0, B_pad - B), (0, 0)))

    # Pre-cast weights AND the streaming state to bf16 once (halves DMA bytes,
    # MXU is bf16-native); all LN/ReLU/tanh elementwise math stays f32.
    sb = s.astype(jnp.bfloat16)
    w1b = w1.astype(jnp.bfloat16)
    w2b = w2.astype(jnp.bfloat16)
    w3b = w3p.astype(jnp.bfloat16)

    # Pack the tiny 1-D LN / bias params into one 2-D f32 input.
    ln_params = jnp.stack([b1, g1, be1, b2, g2, be2], axis=0)   # (6, H)

    grid = (B_pad // TB,)

    weight_bytes = (IN * H + H * H + H * O_pad) * 2 + 6 * H * 4 + O_pad * 4
    cost = pl.CostEstimate(
        flops=2 * B_pad * (IN * H + H * H + H * O_pad),
        transcendentals=B_pad * (O_pad + 2),
        bytes_accessed=B_pad * IN * 2 + weight_bytes + B_pad * O_pad * 2,
    )

    res = pl.pallas_call(
        ddpg_actor_kernel,
        out_shape=jax.ShapeDtypeStruct((B_pad, O_pad), jnp.bfloat16),
        grid_spec=pltpu.PrefetchScalarGridSpec(
            num_scalar_prefetch=0,
            grid=grid,
            in_specs=[
                pl.BlockSpec((TB, IN), lambda i: (i, 0)),      # state tile (pipelined)
                pl.BlockSpec((IN, H), lambda i: (0, 0)),       # w1  (resident)
                pl.BlockSpec((H, H), lambda i: (0, 0)),        # w2  (resident)
                pl.BlockSpec((H, O_pad), lambda i: (0, 0)),    # w3  (resident, padded)
                pl.BlockSpec((6, H), lambda i: (0, 0)),        # packed b/gamma/beta
                pl.BlockSpec((1, O_pad), lambda i: (0, 0)),    # b3 (padded)
            ],
            out_specs=pl.BlockSpec((TB, O_pad), lambda i: (i, 0)),
        ),
        compiler_params=pltpu.CompilerParams(
            dimension_semantics=("parallel",),
            vmem_limit_bytes=32 * 1024 * 1024,   # headroom if TB/H are scaled up
        ),
        cost_estimate=cost,
    )(sb, w1b, w2b, w3b, ln_params, b3p)

    return res[:B, :O].astype(jnp.float32)


# ---------------------------------------------------------------------------
# Parameter init (mimics PyTorch defaults) and a pure-JAX f32 reference.
# ---------------------------------------------------------------------------
def init_params(key, input_shape, output_shape, hidden):
    ks = jax.random.split(key, 8)

    def linear_init(kw, kb, fan_in, fan_out, scale=1.0):
        bound = 1.0 / jnp.sqrt(fan_in)
        # stored as (in, out) == PyTorch weight.T
        w = jax.random.uniform(kw, (fan_in, fan_out), jnp.float32, -bound, bound) * scale
        b = jax.random.uniform(kb, (fan_out,), jnp.float32, -bound, bound) * scale
        return w, b

    w1, b1 = linear_init(ks[0], ks[1], input_shape, hidden)
    w2, b2 = linear_init(ks[2], ks[3], hidden, hidden)
    w3, b3 = linear_init(ks[4], ks[5], hidden, output_shape, scale=0.1)

    # LayerNorm affine params: gamma ~ U(0,1), beta = 0 (as in the torch code)
    g1 = jax.random.uniform(ks[6], (hidden,), jnp.float32, 0.0, 1.0)
    be1 = jnp.zeros((hidden,), jnp.float32)
    g2 = jax.random.uniform(ks[7], (hidden,), jnp.float32, 0.0, 1.0)
    be2 = jnp.zeros((hidden,), jnp.float32)

    return (w1, b1, g1, be1, w2, b2, g2, be2, w3, b3)


def _layernorm_rowwise_ref(x, gamma, beta, eps):
    n = x.shape[-1]
    mean = jnp.mean(x, axis=-1, keepdims=True)
    c = x - mean
    var_unbiased = jnp.sum(c * c, axis=-1, keepdims=True) / (n - 1)
    std = jnp.sqrt(var_unbiased)
    return gamma[None, :] * (c / (std + eps)) + beta[None, :]


def reference_forward(s, params):
    """Pure f32 JAX reference (exact divide, f32 matmuls)."""
    (w1, b1, g1, be1, w2, b2, g2, be2, w3, b3) = params
    h = s @ w1 + b1
    h = _layernorm_rowwise_ref(h, g1, be1, EPS)
    h = jnp.maximum(h, 0.0)
    h = h @ w2 + b2
    h = _layernorm_rowwise_ref(h, g2, be2, EPS)
    h = jnp.maximum(h, 0.0)
    return jnp.tanh(h @ w3 + b3)


if __name__ == "__main__":
    key = jax.random.PRNGKey(0)
    k_in, k_p = jax.random.split(key)

    batch = 256          # splits into 2 tiles -> exercises the parallel grid
    input_shape = 16
    hidden = 128
    output_shape = 8

    s = jax.random.normal(k_in, (batch, input_shape), jnp.float32)
    params = init_params(k_p, input_shape, output_shape, hidden)

    out = jax.block_until_ready(ddpg_actor_forward(s, params))
    ref = reference_forward(s, params)

    assert out.shape == (batch, output_shape)
    assert bool(jnp.all(jnp.isfinite(out)))
    # bf16 MXU operands / bf16 output drift slightly from the pure-f32
    # reference; the LN divide is exact so 3e-2 is comfortably conservative.
    err = float(jnp.max(jnp.abs(out - ref)))
    assert jnp.allclose(out, ref, atol=3e-2, rtol=3e-2), f"max abs err {err}"

    # Batch-padding path (B not a multiple of the tile / of 8).
    s2 = jax.random.normal(k_in, (20, input_shape), jnp.float32)
    out2 = jax.block_until_ready(ddpg_actor_forward(s2, params))
    ref2 = reference_forward(s2, params)
    assert out2.shape == (20, output_shape)
    assert jnp.allclose(out2, ref2, atol=3e-2, rtol=3e-2)

    # Larger-batch path: exercises the full 512-row tile + tail padding.
    s3 = jax.random.normal(k_in, (1037, input_shape), jnp.float32)
    out3 = jax.block_until_ready(ddpg_actor_forward(s3, params))
    ref3 = reference_forward(s3, params)
    assert out3.shape == (1037, output_shape)
    assert jnp.allclose(out3, ref3, atol=3e-2, rtol=3e-2)

    print("KERNEL_OK")
</pallas_src>

<mosaic_0001>
module attributes {stable_mosaic.version = 11 : i64} {
  func.func @ddpg_actor_kernel(%arg0: i32, %arg1: memref<128x16xbf16, #tpu.memory_space<vmem>>, %arg2: memref<16x128xbf16, #tpu.memory_space<vmem>>, %arg3: memref<128x128xbf16, #tpu.memory_space<vmem>>, %arg4: memref<128x128xbf16, #tpu.memory_space<vmem>>, %arg5: memref<6x128xf32, #tpu.memory_space<vmem>>, %arg6: memref<1x128xf32, #tpu.memory_space<vmem>>, %arg7: memref<128x128xbf16, #tpu.memory_space<vmem>>) attributes {dimension_semantics = [#tpu.dimension_semantics<parallel>], iteration_bounds = array<i64: 2>, scalar_prefetch = 0 : i64, scratch_operands = 0 : i64, tpu.core_type = #tpu.core_type<tc>, window_params = [{transform_indices = @transform_0, window_bounds = array<i64: 128, 16>}, {pipeline_mode = #tpu.pipeline_mode<synchronous>, transform_indices = @transform_1, window_bounds = array<i64: 16, 128>}, {pipeline_mode = #tpu.pipeline_mode<synchronous>, transform_indices = @transform_2, window_bounds = array<i64: 128, 128>}, {pipeline_mode = #tpu.pipeline_mode<synchronous>, transform_indices = @transform_3, window_bounds = array<i64: 128, 128>}, {pipeline_mode = #tpu.pipeline_mode<synchronous>, transform_indices = @transform_4, window_bounds = array<i64: 6, 128>}, {pipeline_mode = #tpu.pipeline_mode<synchronous>, transform_indices = @transform_5, window_bounds = array<i64: 1, 128>}, {transform_indices = @transform_6, window_bounds = array<i64: 128, 128>}]} {
    %c0 = arith.constant 0 : index
    %c0_0 = arith.constant 0 : index
    %0 = vector.load %arg5[%c0, %c0_0] : memref<6x128xf32, #tpu.memory_space<vmem>>, vector<6x128xf32>
    %1 = vector.extract_strided_slice %0 {offsets = [0, 0], sizes = [1, 128], strides = [1, 1]} : vector<6x128xf32> to vector<1x128xf32>
    %2 = vector.extract_strided_slice %0 {offsets = [1, 0], sizes = [1, 128], strides = [1, 1]} : vector<6x128xf32> to vector<1x128xf32>
    %3 = vector.extract_strided_slice %0 {offsets = [2, 0], sizes = [1, 128], strides = [1, 1]} : vector<6x128xf32> to vector<1x128xf32>
    %4 = vector.extract_strided_slice %0 {offsets = [3, 0], sizes = [1, 128], strides = [1, 1]} : vector<6x128xf32> to vector<1x128xf32>
    %5 = vector.extract_strided_slice %0 {offsets = [4, 0], sizes = [1, 128], strides = [1, 1]} : vector<6x128xf32> to vector<1x128xf32>
    %6 = vector.extract_strided_slice %0 {offsets = [5, 0], sizes = [1, 128], strides = [1, 1]} : vector<6x128xf32> to vector<1x128xf32>
    %c0_1 = arith.constant 0 : index
    %c0_2 = arith.constant 0 : index
    %7 = vector.load %arg1[%c0_1, %c0_2] : memref<128x16xbf16, #tpu.memory_space<vmem>>, vector<128x16xbf16>
    %c0_3 = arith.constant 0 : index
    %c0_4 = arith.constant 0 : index
    %8 = vector.load %arg2[%c0_3, %c0_4] : memref<16x128xbf16, #tpu.memory_space<vmem>>, vector<16x128xbf16>
    %cst = arith.constant dense<0.000000e+00> : vector<128x128xf32>
    %9 = tpu.matmul %7, %8, %cst {dimension_numbers = #tpu.dot_dimension_numbers<[1], [0], [0], [1], [0, 0, 1, 1], [], []>} : vector<128x16xbf16>, vector<16x128xbf16>, vector<128x128xf32> -> vector<128x128xf32>
    %10 = vector.broadcast %1 : vector<1x128xf32> to vector<128x128xf32>
    %11 = arith.addf %9, %10 : vector<128x128xf32>
    %cst_5 = arith.constant dense<0.000000e+00> : vector<128xf32>
    %12 = vector.multi_reduction <add>, %11, %cst_5 [1] : vector<128x128xf32> to vector<128xf32>
    %13 = vector.shape_cast %12 : vector<128xf32> to vector<128x1xf32>
    %cst_6 = arith.constant 1.280000e+02 : f32
    %14 = vector.broadcast %cst_6 : f32 to vector<128x1xf32>
    %15 = arith.divf %13, %14 : vector<128x1xf32>
    %16 = vector.broadcast %15 : vector<128x1xf32> to vector<128x128xf32>
    %17 = arith.subf %11, %16 : vector<128x128xf32>
    %18 = arith.mulf %17, %17 : vector<128x128xf32>
    %cst_7 = arith.constant dense<0.000000e+00> : vector<128xf32>
    %19 = vector.multi_reduction <add>, %18, %cst_7 [1] : vector<128x128xf32> to vector<128xf32>
    %20 = vector.shape_cast %19 : vector<128xf32> to vector<128x1xf32>
    %cst_8 = arith.constant 0.00787401571 : f32
    %21 = vector.broadcast %cst_8 : f32 to vector<128x1xf32>
    %22 = arith.mulf %20, %21 : vector<128x1xf32>
    %23 = math.sqrt %22 : vector<128x1xf32>
    %cst_9 = arith.constant 9.99999974E-6 : f32
    %24 = vector.broadcast %cst_9 : f32 to vector<128x1xf32>
    %25 = arith.addf %23, %24 : vector<128x1xf32>
    %26 = vector.broadcast %25 : vector<128x1xf32> to vector<128x128xf32>
    %27 = arith.divf %17, %26 : vector<128x128xf32>
    %28 = vector.broadcast %2 : vector<1x128xf32> to vector<128x128xf32>
    %29 = arith.mulf %28, %27 : vector<128x128xf32>
    %30 = vector.broadcast %3 : vector<1x128xf32> to vector<128x128xf32>
    %31 = arith.addf %29, %30 : vector<128x128xf32>
    %cst_10 = arith.constant 0.000000e+00 : f32
    %32 = vector.broadcast %cst_10 : f32 to vector<128x128xf32>
    %33 = arith.maximumf %31, %32 : vector<128x128xf32>
    %34 = arith.truncf %33 : vector<128x128xf32> to vector<128x128xbf16>
    %c0_11 = arith.constant 0 : index
    %c0_12 = arith.constant 0 : index
    %35 = vector.load %arg3[%c0_11, %c0_12] : memref<128x128xbf16, #tpu.memory_space<vmem>>, vector<128x128xbf16>
    %cst_13 = arith.constant dense<0.000000e+00> : vector<128x128xf32>
    %36 = tpu.matmul %34, %35, %cst_13 {dimension_numbers = #tpu.dot_dimension_numbers<[1], [0], [0], [1], [0, 0, 1, 1], [], []>} : vector<128x128xbf16>, vector<128x128xbf16>, vector<128x128xf32> -> vector<128x128xf32>
    %37 = vector.broadcast %4 : vector<1x128xf32> to vector<128x128xf32>
    %38 = arith.addf %36, %37 : vector<128x128xf32>
    %cst_14 = arith.constant dense<0.000000e+00> : vector<128xf32>
    %39 = vector.multi_reduction <add>, %38, %cst_14 [1] : vector<128x128xf32> to vector<128xf32>
    %40 = vector.shape_cast %39 : vector<128xf32> to vector<128x1xf32>
    %cst_15 = arith.constant 1.280000e+02 : f32
    %41 = vector.broadcast %cst_15 : f32 to vector<128x1xf32>
    %42 = arith.divf %40, %41 : vector<128x1xf32>
    %43 = vector.broadcast %42 : vector<128x1xf32> to vector<128x128xf32>
    %44 = arith.subf %38, %43 : vector<128x128xf32>
    %45 = arith.mulf %44, %44 : vector<128x128xf32>
    %cst_16 = arith.constant dense<0.000000e+00> : vector<128xf32>
    %46 = vector.multi_reduction <add>, %45, %cst_16 [1] : vector<128x128xf32> to vector<128xf32>
    %47 = vector.shape_cast %46 : vector<128xf32> to vector<128x1xf32>
    %cst_17 = arith.constant 0.00787401571 : f32
    %48 = vector.broadcast %cst_17 : f32 to vector<128x1xf32>
    %49 = arith.mulf %47, %48 : vector<128x1xf32>
    %50 = math.sqrt %49 : vector<128x1xf32>
    %cst_18 = arith.constant 9.99999974E-6 : f32
    %51 = vector.broadcast %cst_18 : f32 to vector<128x1xf32>
    %52 = arith.addf %50, %51 : vector<128x1xf32>
    %53 = vector.broadcast %52 : vector<128x1xf32> to vector<128x128xf32>
    %54 = arith.divf %44, %53 : vector<128x128xf32>
    %55 = vector.broadcast %5 : vector<1x128xf32> to vector<128x128xf32>
    %56 = arith.mulf %55, %54 : vector<128x128xf32>
    %57 = vector.broadcast %6 : vector<1x128xf32> to vector<128x128xf32>
    %58 = arith.addf %56, %57 : vector<128x128xf32>
    %cst_19 = arith.constant 0.000000e+00 : f32
    %59 = vector.broadcast %cst_19 : f32 to vector<128x128xf32>
    %60 = arith.maximumf %58, %59 : vector<128x128xf32>
    %61 = arith.truncf %60 : vector<128x128xf32> to vector<128x128xbf16>
    %c0_20 = arith.constant 0 : index
    %c0_21 = arith.constant 0 : index
    %62 = vector.load %arg4[%c0_20, %c0_21] : memref<128x128xbf16, #tpu.memory_space<vmem>>, vector<128x128xbf16>
    %cst_22 = arith.constant dense<0.000000e+00> : vector<128x128xf32>
    %63 = tpu.matmul %61, %62, %cst_22 {dimension_numbers = #tpu.dot_dimension_numbers<[1], [0], [0], [1], [0, 0, 1, 1], [], []>} : vector<128x128xbf16>, vector<128x128xbf16>, vector<128x128xf32> -> vector<128x128xf32>
    %c0_23 = arith.constant 0 : index
    %c0_24 = arith.constant 0 : index
    %64 = vector.load %arg6[%c0_23, %c0_24] : memref<1x128xf32, #tpu.memory_space<vmem>>, vector<1x128xf32>
    %65 = vector.broadcast %64 : vector<1x128xf32> to vector<128x128xf32>
    %66 = arith.addf %63, %65 : vector<128x128xf32>
    %67 = math.tanh %66 : vector<128x128xf32>
    %68 = arith.truncf %67 : vector<128x128xf32> to vector<128x128xbf16>
    %c0_25 = arith.constant 0 : index
    %c0_26 = arith.constant 0 : index
    %69 = vector.load %arg7[%c0_25, %c0_26] : memref<128x128xbf16, #tpu.memory_space<vmem>>, vector<128x128xbf16>
    tpu.vector_store %arg7[%c0_25, %c0_26], %68 {strides = array<i32>} : memref<128x128xbf16, #tpu.memory_space<vmem>>, vector<128x128xbf16>,
    return
  }
  func.func @transform_0(%arg0: i32) -> (i32, i32) {
    %c0_i32 = arith.constant 0 : i32
    %c0_i32_0 = arith.constant 0 : i32
    return %arg0, %c0_i32 : i32, i32
  }
  func.func @transform_1(%arg0: i32) -> (i32, i32) {
    %c0_i32 = arith.constant 0 : i32
    %c0_i32_0 = arith.constant 0 : i32
    %c0_i32_1 = arith.constant 0 : i32
    return %c0_i32, %c0_i32_0 : i32, i32
  }
  func.func @transform_2(%arg0: i32) -> (i32, i32) {
    %c0_i32 = arith.constant 0 : i32
    %c0_i32_0 = arith.constant 0 : i32
    %c0_i32_1 = arith.constant 0 : i32
    return %c0_i32, %c0_i32_0 : i32, i32
  }
  func.func @transform_3(%arg0: i32) -> (i32, i32) {
    %c0_i32 = arith.constant 0 : i32
    %c0_i32_0 = arith.constant 0 : i32
    %c0_i32_1 = arith.constant 0 : i32
    return %c0_i32, %c0_i32_0 : i32, i32
  }
  func.func @transform_4(%arg0: i32) -> (i32, i32) {
    %c0_i32 = arith.constant 0 : i32
    %c0_i32_0 = arith.constant 0 : i32
    %c0_i32_1 = arith.constant 0 : i32
    return %c0_i32, %c0_i32_0 : i32, i32
  }
  func.func @transform_5(%arg0: i32) -> (i32, i32) {
    %c0_i32 = arith.constant 0 : i32
    %c0_i32_0 = arith.constant 0 : i32
    %c0_i32_1 = arith.constant 0 : i32
    return %c0_i32, %c0_i32_0 : i32, i32
  }
  func.func @transform_6(%arg0: i32) -> (i32, i32) {
    %c0_i32 = arith.constant 0 : i32
    %c0_i32_0 = arith.constant 0 : i32
    return %arg0, %c0_i32 : i32, i32
  }
}

</mosaic_0001>

<llo_original>
// kernel: ddpg_actor_forward.1
$region0: #{ddpg_actor_forward.1}
  #allocation0 [shape = 'u32[]', space=smem, size = 0x4, offset = 0x4, fixed_abs, tag = 'smem constant byte address 0x4 - core index']
  #allocation1 [shape = 'u32[144,128]{1,0:T(1,128)}', space=vmem, size = 0x12000, scoped, tag = 'internal scratch']
  %s0 = inlined_call_operand.vmem [shape: bf16[256,16], index: 0, kind: input, shape index: {}]
  %s1 = inlined_call_operand.vmem [shape: bf16[16,128], index: 1, kind: input, shape index: {}]
  %s2 = inlined_call_operand.vmem [shape: bf16[128,128], index: 2, kind: input, shape index: {}]
  %s3 = inlined_call_operand.vmem [shape: bf16[128,128], index: 3, kind: input, shape index: {}]
  %s4 = inlined_call_operand.vmem [shape: f32[6,128], index: 4, kind: input, shape index: {}]
  %s5 = inlined_call_operand.vmem [shape: f32[1,128], index: 5, kind: input, shape index: {}]
  %s6 = inlined_call_operand.vmem [shape: bf16[256,128], index: 6, kind: output, shape index: {}]
  %s7 = sld [smem:[#allocation0]]
  $region57: #{ddpg_actor_forward.1} parent=0
    _
  %s9 = ssub.s32 1, %s7
  %s10 = scalar_select 0, %s9, %s7
  loop: start=0, step=1, limit=4
  $region2: #{ddpg_actor_forward.1} parent=0 // loop_pre_header
    _
  $region3: #{ddpg_actor_forward.1} parent=0 // loop_header
    %s12 = sphi 0, %s16
    %p13 = scmp.ge.s32.totalorder %s12, 4
    %s22 = sphi 0, %s24
    %s25 = sphi 0, %s22
    %s26 = sphi 0, %s25
    %s42 = sphi 0, %s26
    %s46 = sphi 0, %s46
    %s48 = sphi 0, %s46
    %s49 = sphi 0, %s48
    %s63 = sphi 0, %s49
    %s67 = sphi 0, %s67
    %s69 = sphi 0, %s67
    %s70 = sphi 0, %s69
    %s84 = sphi 0, %s70
    %s88 = sphi 0, %s88
    %s90 = sphi 0, %s88
    %s91 = sphi 0, %s90
    %s105 = sphi 0, %s91
    %s109 = sphi 0, %s109
    %s111 = sphi 0, %s109
    %s112 = sphi 0, %s111
    %s126 = sphi 0, %s112
    %s130 = sphi 0, %s130
    %s132 = sphi 0, %s130
    %s133 = sphi 0, %s132
    %s147 = sphi 0, %s133
    %s153 = sphi 0, %s155
    %s156 = sphi 0, %s153
    %s157 = sphi 0, %s156
    %s173 = sphi 0, %s157
  $region4: #{ddpg_actor_forward.1} parent=0 // loop_header_branch
    %15 = sbr.rel (%p13) target = $region8
  $region5: #{ddpg_actor_forward.1} parent=0 // loop_body
    %s17 = ssub.s32 %s12, 1
    %s18 = ssub.s32 %s12, 2
    %s19 = sadd.s32 %s12, 1
    %s20 = ssub.s32 %s12, %s19
    %p21 = scmp.eq.s32.totalorder %s20, 0
    %s23 = sadd.s32 %s22, 1
    %s24 = scalar_select %p21, %s22, %s23
    %p27 = pneg %p21
    %p28 = scmp.eq.s32.totalorder %s12, 1
    %p29 = por %p27, %p28
    %p30 = scmp.ne.s32.totalorder %s22, %s25
    %p31 = scmp.eq.s32.totalorder %s12, 0
    %p32 = por %p30, %p31
    %p33 = scmp.ne.s32.totalorder %s22, %s25
    %p34 = scmp.eq.s32.totalorder %s17, 1
    %p35 = por %p33, %p34
    %p36 = scmp.ne.s32.totalorder %s25, %s26
    %p37 = scmp.eq.s32.totalorder %s17, 0
    %p38 = por %p36, %p37
    %p39 = scmp.ne.s32.totalorder %s25, %s26
    %p40 = scmp.eq.s32.totalorder %s18, 1
    %p41 = por %p39, %p40
    %p43 = scmp.ne.s32.totalorder %s26, %s42
    %p44 = scmp.eq.s32.totalorder %s18, 0
    %p45 = por %p43, %p44
    %s47 = sadd.s32 %s46, 1
    %p50 = scmp.eq.s32.totalorder %s12, 1
    %p51 = scmp.ne.s32.totalorder %s46, %s48
    %p52 = scmp.eq.s32.totalorder %s12, 0
    %p53 = por %p51, %p52
    %p54 = scmp.ne.s32.totalorder %s46, %s48
    %p55 = scmp.eq.s32.totalorder %s17, 1
    %p56 = por %p54, %p55
    %p57 = scmp.ne.s32.totalorder %s48, %s49
    %p58 = scmp.eq.s32.totalorder %s17, 0
    %p59 = por %p57, %p58
    %p60 = scmp.ne.s32.totalorder %s48, %s49
    %p61 = scmp.eq.s32.totalorder %s18, 1
    %p62 = por %p60, %p61
    %p64 = scmp.ne.s32.totalorder %s49, %s63
    %p65 = scmp.eq.s32.totalorder %s18, 0
    %p66 = por %p64, %p65
    %s68 = sadd.s32 %s67, 1
    %p71 = scmp.eq.s32.totalorder %s12, 1
    %p72 = scmp.ne.s32.totalorder %s67, %s69
    %p73 = scmp.eq.s32.totalorder %s12, 0
    %p74 = por %p72, %p73
    %p75 = scmp.ne.s32.totalorder %s67, %s69
    %p76 = scmp.eq.s32.totalorder %s17, 1
    %p77 = por %p75, %p76
    %p78 = scmp.ne.s32.totalorder %s69, %s70
    %p79 = scmp.eq.s32.totalorder %s17, 0
    %p80 = por %p78, %p79
    %p81 = scmp.ne.s32.totalorder %s69, %s70
    %p82 = scmp.eq.s32.totalorder %s18, 1
    %p83 = por %p81, %p82
    %p85 = scmp.ne.s32.totalorder %s70, %s84
    %p86 = scmp.eq.s32.totalorder %s18, 0
    %p87 = por %p85, %p86
    %s89 = sadd.s32 %s88, 1
    %p92 = scmp.eq.s32.totalorder %s12, 1
    %p93 = scmp.ne.s32.totalorder %s88, %s90
    %p94 = scmp.eq.s32.totalorder %s12, 0
    %p95 = por %p93, %p94
    %p96 = scmp.ne.s32.totalorder %s88, %s90
    %p97 = scmp.eq.s32.totalorder %s17, 1
    %p98 = por %p96, %p97
    %p99 = scmp.ne.s32.totalorder %s90, %s91
    %p100 = scmp.eq.s32.totalorder %s17, 0
    %p101 = por %p99, %p100
    %p102 = scmp.ne.s32.totalorder %s90, %s91
    %p103 = scmp.eq.s32.totalorder %s18, 1
    %p104 = por %p102, %p103
    %p106 = scmp.ne.s32.totalorder %s91, %s105
    %p107 = scmp.eq.s32.totalorder %s18, 0
    %p108 = por %p106, %p107
    %s110 = sadd.s32 %s109, 1
    %p113 = scmp.eq.s32.totalorder %s12, 1
    %p114 = scmp.ne.s32.totalorder %s109, %s111
    %p115 = scmp.eq.s32.totalorder %s12, 0
    %p116 = por %p114, %p115
    %p117 = scmp.ne.s32.totalorder %s109, %s111
    %p118 = scmp.eq.s32.totalorder %s17, 1
    %p119 = por %p117, %p118
    %p120 = scmp.ne.s32.totalorder %s111, %s112
    %p121 = scmp.eq.s32.totalorder %s17, 0
    %p122 = por %p120, %p121
    %p123 = scmp.ne.s32.totalorder %s111, %s112
    %p124 = scmp.eq.s32.totalorder %s18, 1
    %p125 = por %p123, %p124
    %p127 = scmp.ne.s32.totalorder %s112, %s126
    %p128 = scmp.eq.s32.totalorder %s18, 0
    %p129 = por %p127, %p128
    %s131 = sadd.s32 %s130, 1
    %p134 = scmp.eq.s32.totalorder %s12, 1
    %p135 = scmp.ne.s32.totalorder %s130, %s132
    %p136 = scmp.eq.s32.totalorder %s12, 0
    %p137 = por %p135, %p136
    %p138 = scmp.ne.s32.totalorder %s130, %s132
    %p139 = scmp.eq.s32.totalorder %s17, 1
    %p140 = por %p138, %p139
    %p141 = scmp.ne.s32.totalorder %s132, %s133
    %p142 = scmp.eq.s32.totalorder %s17, 0
    %p143 = por %p141, %p142
    %p144 = scmp.ne.s32.totalorder %s132, %s133
    %p145 = scmp.eq.s32.totalorder %s18, 1
    %p146 = por %p144, %p145
    %p148 = scmp.ne.s32.totalorder %s133, %s147
    %p149 = scmp.eq.s32.totalorder %s18, 0
    %p150 = por %p148, %p149
    %s151 = ssub.s32 %s12, %s19
    %p152 = scmp.eq.s32.totalorder %s151, 0
    %s154 = sadd.s32 %s153, 1
    %s155 = scalar_select %p152, %s153, %s154
    %p158 = pneg %p152
    %p159 = scmp.eq.s32.totalorder %s12, 1
    %p160 = por %p158, %p159
    %p161 = scmp.ne.s32.totalorder %s153, %s156
    %p162 = scmp.eq.s32.totalorder %s12, 0
    %p163 = por %p161, %p162
    %p164 = scmp.ne.s32.totalorder %s153, %s156
    %p165 = scmp.eq.s32.totalorder %s17, 1
    %p166 = por %p164, %p165
    %p167 = scmp.ne.s32.totalorder %s156, %s157
    %p168 = scmp.eq.s32.totalorder %s17, 0
    %p169 = por %p167, %p168
    %p170 = scmp.ne.s32.totalorder %s156, %s157
    %p171 = scmp.eq.s32.totalorder %s18, 1
    %p172 = por %p170, %p171
    %p174 = scmp.ne.s32.totalorder %s157, %s173
    %p175 = scmp.eq.s32.totalorder %s18, 0
    %p176 = por %p174, %p175
    %p177 = scmp.le.s32.totalorder 1, %s12
    %p178 = scmp.lt.s32.totalorder %s12, 3
    %p179 = pnand %p177, %p178
    %p180 = pneg %p179
    // Predicated region
    $region9: #{ddpg_actor_forward.1} parent=5 // pred_check
      _
    $region10: #{ddpg_actor_forward.1} parent=5 // pred_check_branch
      %182 = sbr.rel (%p179) target = $region12
    $region11: #{ddpg_actor_forward.1} parent=5 // pred_region
      %s183 = ssub.s32 %s12, 1
      // Predicated region
      $region13: #{ddpg_actor_forward.1} parent=11 // pred_check
        %p184 = pneg %p59
      $region14: #{ddpg_actor_forward.1} parent=11 // pred_check_branch
        %186 = sbr.rel (%p184) target = $region16
      $region15: #{ddpg_actor_forward.1} parent=11 // pred_region
        _
      $region16: #{ddpg_actor_forward.1} parent=11 // pred_fallthru
        _
      // Predicated region
      $region17: #{ddpg_actor_forward.1} parent=11 // pred_check
        %p187 = pneg %p80
      $region18: #{ddpg_actor_forward.1} parent=11 // pred_check_branch
        %189 = sbr.rel (%p187) target = $region20
      $region19: #{ddpg_actor_forward.1} parent=11 // pred_region
        _
      $region20: #{ddpg_actor_forward.1} parent=11 // pred_fallthru
        _
      // Predicated region
      $region21: #{ddpg_actor_forward.1} parent=11 // pred_check
        %p190 = pneg %p101
      $region22: #{ddpg_actor_forward.1} parent=11 // pred_check_branch
        %192 = sbr.rel (%p190) target = $region24
      $region23: #{ddpg_actor_forward.1} parent=11 // pred_region
        _
      $region24: #{ddpg_actor_forward.1} parent=11 // pred_fallthru
        _
      // Predicated region
      $region25: #{ddpg_actor_forward.1} parent=11 // pred_check
        %p193 = pneg %p122
      $region26: #{ddpg_actor_forward.1} parent=11 // pred_check_branch
        %195 = sbr.rel (%p193) target = $region28
      $region27: #{ddpg_actor_forward.1} parent=11 // pred_region
        _
      $region28: #{ddpg_actor_forward.1} parent=11 // pred_fallthru
        _
      // Predicated region
      $region29: #{ddpg_actor_forward.1} parent=11 // pred_check
        %p196 = pneg %p143
      $region30: #{ddpg_actor_forward.1} parent=11 // pred_check_branch
        %198 = sbr.rel (%p196) target = $region32
      $region31: #{ddpg_actor_forward.1} parent=11 // pred_region
        _
      $region32: #{ddpg_actor_forward.1} parent=11 // pred_fallthru
        _
    $region12: #{ddpg_actor_forward.1} parent=5 // pred_fallthru
      _
    %p199 = scmp.lt.s32.totalorder %s12, 2
    // Predicated region
    $region33: #{ddpg_actor_forward.1} parent=5 // pred_check
      %p200 = pneg %p199
    $region34: #{ddpg_actor_forward.1} parent=5 // pred_check_branch
      %202 = sbr.rel (%p200) target = $region36
    $region35: #{ddpg_actor_forward.1} parent=5 // pred_region
      // Predicated region
      $region37: #{ddpg_actor_forward.1} parent=35 // pred_check
        %p203 = pneg %p32
      $region38: #{ddpg_actor_forward.1} parent=35 // pred_check_branch
        %205 = sbr.rel (%p203) target = $region40
      $region39: #{ddpg_actor_forward.1} parent=35 // pred_region
        %s206 = smul.u32 16, %s12
        %p207 = scmp.lt.s32.totalorder %s206, 31
        %s208 = scalar_select %p207, %s206, 31
        %s209 = smul.addr %s208, 4
        %s210 = scalar_lea.vmem %s0, %s209
        %s211 = smul.u32 16, %s12
      $region40: #{ddpg_actor_forward.1} parent=35 // pred_fallthru
        _
    $region36: #{ddpg_actor_forward.1} parent=5 // pred_fallthru
      _
    %p212 = scmp.le.s32.totalorder 1, %s12
    %p213 = scmp.lt.s32.totalorder %s12, 3
    %p214 = pnand %p212, %p213
    %p215 = pneg %p214
    // Predicated region
    $region41: #{ddpg_actor_forward.1} parent=5 // pred_check
      _
    $region42: #{ddpg_actor_forward.1} parent=5 // pred_check_branch
      %217 = sbr.rel (%p214) target = $region44
    $region43: #{ddpg_actor_forward.1} parent=5 // pred_region
      %s218 = ssub.s32 %s12, 1
      %s219 = smul.u32 16, %s17
      %p220 = scmp.lt.s32.totalorder %s219, 31
      %s221 = scalar_select %p220, %s219, 31
      %s222 = smul.addr %s221, 4
      %s223 = scalar_lea.vmem %s0, %s222
      %p224 = pneg %p38
      %p225 = pneg %p35
      %p226 = pneg %p59
      %p227 = pneg %p56
      %p228 = pneg %p80
      %p229 = pneg %p77
      %p230 = pneg %p101
      %p231 = pneg %p98
      %p232 = pneg %p122
      %p233 = pneg %p119
      %p234 = pneg %p143
      %p235 = pneg %p140
      %p236 = pneg %p169
      %p237 = pneg %p166
      %s238 = smul.u32 16, %s17
      %p239 = scmp.lt.s32.totalorder %s238, 31
      %s240 = scalar_select %p239, %s238, 31
      %s241 = smul.addr %s240, 4
      %s242 = scalar_lea.vmem %s6, %s241
      %s243 = smul.u32 16, %s17
      %p244 = scmp.lt.s32.totalorder %s243, 31
      %s245 = scalar_select %p244, %s243, 31
      %s246 = smul.addr %s245, 4
      %s247 = scalar_lea.vmem %s0, %s246
      %s248 = smul.u32 16, %s17
      %s249 = smul.u32 16, %s17
      %p250 = scmp.lt.s32.totalorder %s249, 31
      %s251 = scalar_select %p250, %s249, 31
      %s252 = smul.addr %s251, 4
      %s253 = scalar_lea.vmem %s6, %s252
      %s254 = smul.u32 16, %s17
      %v256 = vld [vmem:[%s4] sm:$0x3f]
      %v257 = vld [vmem:[%s247] sm:$0xf]
      %v258 = vld [vmem:[%s247 + $0x4] sm:$0xf]
      %v259 = vld [vmem:[%s247 + $0x8] sm:$0xf]
      %v260 = vld [vmem:[%s247 + $0xc] sm:$0xf]
      %v261 = vld [vmem:[%s247 + $0x10] sm:$0xf]
      %v262 = vld [vmem:[%s247 + $0x14] sm:$0xf]
      %v263 = vld [vmem:[%s247 + $0x18] sm:$0xf]
      %v264 = vld [vmem:[%s247 + $0x1c] sm:$0xf]
      %v265 = vld [vmem:[%s247 + $0x20] sm:$0xf]
      %v266 = vld [vmem:[%s247 + $0x24] sm:$0xf]
      %v267 = vld [vmem:[%s247 + $0x28] sm:$0xf]
      %v268 = vld [vmem:[%s247 + $0x2c] sm:$0xf]
      %v269 = vld [vmem:[%s247 + $0x30] sm:$0xf]
      %v270 = vld [vmem:[%s247 + $0x34] sm:$0xf]
      %v271 = vld [vmem:[%s247 + $0x38] sm:$0xf]
      %v272 = vld [vmem:[%s247 + $0x3c] sm:$0xf]
      %v273 = vld [vmem:[%s1] sm:$0xf]
      %v274 = vld [vmem:[%s1 + $0x4] sm:$0xf]
      %v275 = vlaneseq
      %v276 = vshrl.u32 %v275, 7
      %v277 = vsub.s32 0, %v276
      %v278 = vrot.slane %v256, %v277
      %v295 = vunpack.c.l.b16 %v257
      %v296 = vunpack.c.l.b16 %v258
      %v297 = vunpack.c.l.b16 %v259
      %v298 = vunpack.c.l.b16 %v260
      %v299 = vunpack.c.l.b16 %v261
      %v300 = vunpack.c.l.b16 %v262
      %v301 = vunpack.c.l.b16 %v263
      %v302 = vunpack.c.l.b16 %v264
      %v303 = vunpack.c.l.b16 %v265
      %v304 = vunpack.c.l.b16 %v266
      %v305 = vunpack.c.l.b16 %v267
      %v306 = vunpack.c.l.b16 %v268
      %v307 = vunpack.c.l.b16 %v269
      %v308 = vunpack.c.l.b16 %v270
      %v309 = vunpack.c.l.b16 %v271
      %v310 = vunpack.c.l.b16 %v272
      %v311 = vpack.c.b16 %v296, %v295
      %v312 = vpack.c.b16 %v298, %v297
      %v313 = vpack.c.b16 %v300, %v299
      %v314 = vpack.c.b16 %v302, %v301
      %v315 = vpack.c.b16 %v304, %v303
      %v316 = vpack.c.b16 %v306, %v305
      %v317 = vpack.c.b16 %v308, %v307
      %v318 = vpack.c.b16 %v310, %v309
      %v321 = vunpack.c.l.b16 %v273
      %v322 = vunpack.c.l.b16 %v274
      %v323 = vpack.c.b16 %v322, %v321
      %vm325 = vcmask 130048
      %v327 = vsel %vm325, %v311, 0
      %v330 = vsel %vm325, %v312, 0
      %v333 = vsel %vm325, %v313, 0
      %v336 = vsel %vm325, %v314, 0
      %v339 = vsel %vm325, %v315, 0
      %v342 = vsel %vm325, %v316, 0
      %v345 = vsel %vm325, %v317, 0
      %v348 = vsel %vm325, %v318, 0
      %350 = vmatprep.subr.bf16.mxu0 0
      %351 = vmatpush1.bf16.msra.mxu0 0
      %352 = vmatprep.subr.bf16.mxu0 0
      %353 = vmatpush1.bf16.msra.mxu0 0
      %354 = vmatprep.subr.bf16.mxu0 0
      %355 = vmatpush1.bf16.msra.mxu0 0
      %356 = vmatprep.subr.bf16.mxu0 0
      %357 = vmatpush1.bf16.msra.mxu0 0
      %358 = vmatprep.subr.bf16.mxu0 0
      %359 = vmatpush1.bf16.msra.mxu0 0
      %360 = vmatprep.subr.bf16.mxu0 0
      %361 = vmatpush1.bf16.msra.mxu0 0
      %362 = vmatprep.subr.bf16.mxu0 0
      %363 = vmatpush1.bf16.msra.mxu0 0
      %364 = vmatprep.subr.bf16.mxu0 0
      %365 = vmatpush1.bf16.msra.mxu0 %v323
      %366 = vmatprep.subr.bf16.mxu0 0
      %367 = vmatpush2.bf16.msra.mxu0 0
      %368 = vmatprep.subr.bf16.mxu0 0
      %369 = vmatpush2.bf16.msra.mxu0 0
      %370 = vmatprep.subr.bf16.mxu0 0
      %371 = vmatpush2.bf16.msra.mxu0 0
      %372 = vmatprep.subr.bf16.mxu0 0
      %373 = vmatpush2.bf16.msra.mxu0 0
      %374 = vmatprep.subr.bf16.mxu0 0
      %375 = vmatpush2.bf16.msra.mxu0 0
      %376 = vmatprep.subr.bf16.mxu0 0
      %377 = vmatpush2.bf16.msra.mxu0 0
      %378 = vmatprep.subr.bf16.mxu0 0
      %379 = vmatpush2.bf16.msra.mxu0 0
      %380 = vmatprep.subr.bf16.mxu0 0
      %381 = vmatpush2.bf16.msra.mxu0 0
      %382 = vmatprep.mubr.bf16.mxu0 0
      %383 = vmatmul.mubr.bf16.gmra.mxu0 %v327
      %v384 = vpop.f32.mrf.mxu0
      %v385 = vadd.f32 %v278, %v384
      %v386 = vpop.f32.mrf.mxu0
      %v387 = vpop.f32.mrf.mxu0
      %v388 = vadd.f32 %v278, %v387
      %v389 = vpop.f32.mrf.mxu0
      %390 = vmatprep.mubr.bf16.mxu0 0
      %391 = vmatmul.mubr.bf16.gmra.mxu0 %v330
      %v392 = vpop.f32.mrf.mxu0
      %v393 = vadd.f32 %v278, %v392
      %v394 = vpop.f32.mrf.mxu0
      %v395 = vpop.f32.mrf.mxu0
      %v396 = vadd.f32 %v278, %v395
      %v397 = vpop.f32.mrf.mxu0
      %398 = vmatprep.mubr.bf16.mxu0 0
      %399 = vmatmul.mubr.bf16.gmra.mxu0 %v333
      %v400 = vpop.f32.mrf.mxu0
      %v401 = vadd.f32 %v278, %v400
      %v402 = vpop.f32.mrf.mxu0
      %v403 = vpop.f32.mrf.mxu0
      %v404 = vadd.f32 %v278, %v403
      %v405 = vpop.f32.mrf.mxu0
      %406 = vmatprep.mubr.bf16.mxu0 0
      %407 = vmatmul.mubr.bf16.gmra.mxu0 %v336
      %v408 = vpop.f32.mrf.mxu0
      %v409 = vadd.f32 %v278, %v408
      %v410 = vpop.f32.mrf.mxu0
      %v411 = vpop.f32.mrf.mxu0
      %v412 = vadd.f32 %v278, %v411
      %v413 = vpop.f32.mrf.mxu0
      %414 = vmatprep.mubr.bf16.mxu0 0
      %415 = vmatmul.mubr.bf16.gmra.mxu0 %v339
      %v416 = vpop.f32.mrf.mxu0
      %v417 = vadd.f32 %v278, %v416
      %v418 = vpop.f32.mrf.mxu0
      %v419 = vpop.f32.mrf.mxu0
      %v420 = vadd.f32 %v278, %v419
      %v421 = vpop.f32.mrf.mxu0
      %422 = vmatprep.mubr.bf16.mxu0 0
      %423 = vmatmul.mubr.bf16.gmra.mxu0 %v342
      %v424 = vpop.f32.mrf.mxu0
      %v425 = vadd.f32 %v278, %v424
      %v426 = vpop.f32.mrf.mxu0
      %v427 = vpop.f32.mrf.mxu0
      %v428 = vadd.f32 %v278, %v427
      %v429 = vpop.f32.mrf.mxu0
      %430 = vmatprep.mubr.bf16.mxu0 0
      %431 = vmatmul.mubr.bf16.gmra.mxu0 %v345
      %v432 = vpop.f32.mrf.mxu0
      %v433 = vadd.f32 %v278, %v432
      %v434 = vpop.f32.mrf.mxu0
      %v435 = vpop.f32.mrf.mxu0
      %v436 = vadd.f32 %v278, %v435
      %v437 = vpop.f32.mrf.mxu0
      %438 = vmatprep.mubr.bf16.mxu0 0
      %439 = vmatmul.mubr.bf16.gmra.mxu0 %v348
      %v440 = vpop.f32.mrf.mxu0
      %v441 = vadd.f32 %v278, %v440
      %v442 = vpop.f32.mrf.mxu0
      %v443 = vpop.f32.mrf.mxu0
      %v444 = vadd.f32 %v278, %v443
      %v445 = vpop.f32.mrf.mxu0
      %446 = vdwg.mxu0
      %447 = vadd.xlane.f32.xlu0 %v385
      %v448 = vpop.xlane.xlu0 %447
      %449 = vadd.xlane.f32.xlu0 %v388
      %v450 = vpop.xlane.xlu0 %449
      %451 = vadd.xlane.f32.xlu0 %v393
      %v452 = vpop.xlane.xlu0 %451
      %453 = vadd.xlane.f32.xlu0 %v396
      %v454 = vpop.xlane.xlu0 %453
      %455 = vadd.xlane.f32.xlu0 %v401
      %v456 = vpop.xlane.xlu0 %455
      %457 = vadd.xlane.f32.xlu0 %v404
      %v458 = vpop.xlane.xlu0 %457
      %459 = vadd.xlane.f32.xlu0 %v409
      %v460 = vpop.xlane.xlu0 %459
      %461 = vadd.xlane.f32.xlu0 %v412
      %v462 = vpop.xlane.xlu0 %461
      %463 = vadd.xlane.f32.xlu0 %v417
      %v464 = vpop.xlane.xlu0 %463
      %465 = vadd.xlane.f32.xlu0 %v420
      %v466 = vpop.xlane.xlu0 %465
      %467 = vadd.xlane.f32.xlu0 %v425
      %v468 = vpop.xlane.xlu0 %467
      %469 = vadd.xlane.f32.xlu0 %v428
      %v470 = vpop.xlane.xlu0 %469
      %471 = vadd.xlane.f32.xlu0 %v433
      %v472 = vpop.xlane.xlu0 %471
      %473 = vadd.xlane.f32.xlu0 %v436
      %v474 = vpop.xlane.xlu0 %473
      %475 = vadd.xlane.f32.xlu0 %v441
      %v476 = vpop.xlane.xlu0 %475
      %477 = vadd.xlane.f32.xlu0 %v444
      %v478 = vpop.xlane.xlu0 %477
      %v479 = vrcp.pop 128.0
      %v480 = vmul.f32 %v448, %v479
      %v481 = vmul.f32 %v450, %v479
      %v482 = vmul.f32 %v452, %v479
      %v483 = vmul.f32 %v454, %v479
      %v484 = vmul.f32 %v456, %v479
      %v485 = vmul.f32 %v458, %v479
      %v486 = vmul.f32 %v460, %v479
      %v487 = vmul.f32 %v462, %v479
      %v488 = vmul.f32 %v464, %v479
      %v489 = vmul.f32 %v466, %v479
      %v490 = vmul.f32 %v468, %v479
      %v491 = vmul.f32 %v470, %v479
      %v492 = vmul.f32 %v472, %v479
      %v493 = vmul.f32 %v474, %v479
      %v494 = vmul.f32 %v476, %v479
      %v495 = vmul.f32 %v478, %v479
      %v496 = vsub.f32 %v385, %v480
      %v497 = vsub.f32 %v388, %v481
      %v498 = vsub.f32 %v393, %v482
      %v499 = vsub.f32 %v396, %v483
      %v500 = vsub.f32 %v401, %v484
      %v501 = vsub.f32 %v404, %v485
      %v502 = vsub.f32 %v409, %v486
      %v503 = vsub.f32 %v412, %v487
      %v504 = vsub.f32 %v417, %v488
      %v505 = vsub.f32 %v420, %v489
      %v506 = vsub.f32 %v425, %v490
      %v507 = vsub.f32 %v428, %v491
      %v508 = vsub.f32 %v433, %v492
      %v509 = vsub.f32 %v436, %v493
      %v510 = vsub.f32 %v441, %v494
      %v511 = vsub.f32 %v444, %v495
      %v512 = vmul.f32 %v496, %v496
      %v513 = vmul.f32 %v497, %v497
      %v514 = vmul.f32 %v498, %v498
      %v515 = vmul.f32 %v499, %v499
      %v516 = vmul.f32 %v500, %v500
      %v517 = vmul.f32 %v501, %v501
      %v518 = vmul.f32 %v502, %v502
      %v519 = vmul.f32 %v503, %v503
      %v520 = vmul.f32 %v504, %v504
      %v521 = vmul.f32 %v505, %v505
      %v522 = vmul.f32 %v506, %v506
      %v523 = vmul.f32 %v507, %v507
      %v524 = vmul.f32 %v508, %v508
      %v525 = vmul.f32 %v509, %v509
      %v526 = vmul.f32 %v510, %v510
      %v527 = vmul.f32 %v511, %v511
      %528 = vadd.xlane.f32.xlu0 %v512
      %v529 = vpop.xlane.xlu0 %528
      %530 = vadd.xlane.f32.xlu0 %v513
      %v531 = vpop.xlane.xlu0 %530
      %532 = vadd.xlane.f32.xlu0 %v514
      %v533 = vpop.xlane.xlu0 %532
      %534 = vadd.xlane.f32.xlu0 %v515
      %v535 = vpop.xlane.xlu0 %534
      %536 = vadd.xlane.f32.xlu0 %v516
      %v537 = vpop.xlane.xlu0 %536
      %538 = vadd.xlane.f32.xlu0 %v517
      %v539 = vpop.xlane.xlu0 %538
      %540 = vadd.xlane.f32.xlu0 %v518
      %v541 = vpop.xlane.xlu0 %540
      %542 = vadd.xlane.f32.xlu0 %v519
      %v543 = vpop.xlane.xlu0 %542
      %544 = vadd.xlane.f32.xlu0 %v520
      %v545 = vpop.xlane.xlu0 %544
      %546 = vadd.xlane.f32.xlu0 %v521
      %v547 = vpop.xlane.xlu0 %546
      %548 = vadd.xlane.f32.xlu0 %v522
      %v549 = vpop.xlane.xlu0 %548
      %550 = vadd.xlane.f32.xlu0 %v523
      %v551 = vpop.xlane.xlu0 %550
      %552 = vadd.xlane.f32.xlu0 %v524
      %v553 = vpop.xlane.xlu0 %552
      %554 = vadd.xlane.f32.xlu0 %v525
      %v555 = vpop.xlane.xlu0 %554
      %556 = vadd.xlane.f32.xlu0 %v526
      %v557 = vpop.xlane.xlu0 %556
      %558 = vadd.xlane.f32.xlu0 %v527
      %v559 = vpop.xlane.xlu0 %558
      %v560 = vmul.f32 %v529, 0.007874016
      %v561 = vmul.f32 %v531, 0.007874016
      %v562 = vmul.f32 %v533, 0.007874016
      %v563 = vmul.f32 %v535, 0.007874016
      %v564 = vmul.f32 %v537, 0.007874016
      %v565 = vmul.f32 %v539, 0.007874016
      %v566 = vmul.f32 %v541, 0.007874016
      %v567 = vmul.f32 %v543, 0.007874016
      %v568 = vmul.f32 %v545, 0.007874016
      %v569 = vmul.f32 %v547, 0.007874016
      %v570 = vmul.f32 %v549, 0.007874016
      %v571 = vmul.f32 %v551, 0.007874016
      %v572 = vmul.f32 %v553, 0.007874016
      %v573 = vmul.f32 %v555, 0.007874016
      %v574 = vmul.f32 %v557, 0.007874016
      %v575 = vmul.f32 %v559, 0.007874016
      %v576 = vrsqrt.pop %v560
      %v577 = vmul.f32 %v560, %v576
      %vm578 = vcmp.eq.f32.partialorder %v560, inf
      %v579 = vsel %vm578, %v560, %v577
      %vm580 = vcmp.eq.f32.partialorder %v560, 0.0
      %v581 = vand.u32 %v560, 2147483648
      %v582 = vsel %vm580, %v581, %v579
      %v583 = vrsqrt.pop %v561
      %v584 = vmul.f32 %v561, %v583
      %vm585 = vcmp.eq.f32.partialorder %v561, inf
      %v586 = vsel %vm585, %v561, %v584
      %vm587 = vcmp.eq.f32.partialorder %v561, 0.0
      %v588 = vand.u32 %v561, 2147483648
      %v589 = vsel %vm587, %v588, %v586
      %v590 = vrsqrt.pop %v562
      %v591 = vmul.f32 %v562, %v590
      %vm592 = vcmp.eq.f32.partialorder %v562, inf
      %v593 = vsel %vm592, %v562, %v591
      %vm594 = vcmp.eq.f32.partialorder %v562, 0.0
      %v595 = vand.u32 %v562, 2147483648
      %v596 = vsel %vm594, %v595, %v593
      %v597 = vrsqrt.pop %v563
      %v598 = vmul.f32 %v563, %v597
      %vm599 = vcmp.eq.f32.partialorder %v563, inf
      %v600 = vsel %vm599, %v563, %v598
      %vm601 = vcmp.eq.f32.partialorder %v563, 0.0
      %v602 = vand.u32 %v563, 2147483648
      %v603 = vsel %vm601, %v602, %v600
      %v604 = vrsqrt.pop %v564
      %v605 = vmul.f32 %v564, %v604
      %vm606 = vcmp.eq.f32.partialorder %v564, inf
      %v607 = vsel %vm606, %v564, %v605
      %vm608 = vcmp.eq.f32.partialorder %v564, 0.0
      %v609 = vand.u32 %v564, 2147483648
      %v610 = vsel %vm608, %v609, %v607
      %v611 = vrsqrt.pop %v565
      %v612 = vmul.f32 %v565, %v611
      %vm613 = vcmp.eq.f32.partialorder %v565, inf
      %v614 = vsel %vm613, %v565, %v612
      %vm615 = vcmp.eq.f32.partialorder %v565, 0.0
      %v616 = vand.u32 %v565, 2147483648
      %v617 = vsel %vm615, %v616, %v614
      %v618 = vrsqrt.pop %v566
      %v619 = vmul.f32 %v566, %v618
      %vm620 = vcmp.eq.f32.partialorder %v566, inf
      %v621 = vsel %vm620, %v566, %v619
      %vm622 = vcmp.eq.f32.partialorder %v566, 0.0
      %v623 = vand.u32 %v566, 2147483648
      %v624 = vsel %vm622, %v623, %v621
      %v625 = vrsqrt.pop %v567
      %v626 = vmul.f32 %v567, %v625
      %vm627 = vcmp.eq.f32.partialorder %v567, inf
      %v628 = vsel %vm627, %v567, %v626
      %vm629 = vcmp.eq.f32.partialorder %v567, 0.0
      %v630 = vand.u32 %v567, 2147483648
      %v631 = vsel %vm629, %v630, %v628
      %v632 = vrsqrt.pop %v568
      %v633 = vmul.f32 %v568, %v632
      %vm634 = vcmp.eq.f32.partialorder %v568, inf
      %v635 = vsel %vm634, %v568, %v633
      %vm636 = vcmp.eq.f32.partialorder %v568, 0.0
      %v637 = vand.u32 %v568, 2147483648
      %v638 = vsel %vm636, %v637, %v635
      %v639 = vrsqrt.pop %v569
      %v640 = vmul.f32 %v569, %v639
      %vm641 = vcmp.eq.f32.partialorder %v569, inf
      %v642 = vsel %vm641, %v569, %v640
      %vm643 = vcmp.eq.f32.partialorder %v569, 0.0
      %v644 = vand.u32 %v569, 2147483648
      %v645 = vsel %vm643, %v644, %v642
      %v646 = vrsqrt.pop %v570
      %v647 = vmul.f32 %v570, %v646
      %vm648 = vcmp.eq.f32.partialorder %v570, inf
      %v649 = vsel %vm648, %v570, %v647
      %vm650 = vcmp.eq.f32.partialorder %v570, 0.0
      %v651 = vand.u32 %v570, 2147483648
      %v652 = vsel %vm650, %v651, %v649
      %v653 = vrsqrt.pop %v571
      %v654 = vmul.f32 %v571, %v653
      %vm655 = vcmp.eq.f32.partialorder %v571, inf
      %v656 = vsel %vm655, %v571, %v654
      %vm657 = vcmp.eq.f32.partialorder %v571, 0.0
      %v658 = vand.u32 %v571, 2147483648
      %v659 = vsel %vm657, %v658, %v656
      %v660 = vrsqrt.pop %v572
      %v661 = vmul.f32 %v572, %v660
      %vm662 = vcmp.eq.f32.partialorder %v572, inf
      %v663 = vsel %vm662, %v572, %v661
      %vm664 = vcmp.eq.f32.partialorder %v572, 0.0
      %v665 = vand.u32 %v572, 2147483648
      %v666 = vsel %vm664, %v665, %v663
      %v667 = vrsqrt.pop %v573
      %v668 = vmul.f32 %v573, %v667
      %vm669 = vcmp.eq.f32.partialorder %v573, inf
      %v670 = vsel %vm669, %v573, %v668
      %vm671 = vcmp.eq.f32.partialorder %v573, 0.0
      %v672 = vand.u32 %v573, 2147483648
      %v673 = vsel %vm671, %v672, %v670
      %v674 = vrsqrt.pop %v574
      %v675 = vmul.f32 %v574, %v674
      %vm676 = vcmp.eq.f32.partialorder %v574, inf
      %v677 = vsel %vm676, %v574, %v675
      %vm678 = vcmp.eq.f32.partialorder %v574, 0.0
      %v679 = vand.u32 %v574, 2147483648
      %v680 = vsel %vm678, %v679, %v677
      %v681 = vrsqrt.pop %v575
      %v682 = vmul.f32 %v575, %v681
      %vm683 = vcmp.eq.f32.partialorder %v575, inf
      %v684 = vsel %vm683, %v575, %v682
      %vm685 = vcmp.eq.f32.partialorder %v575, 0.0
      %v686 = vand.u32 %v575, 2147483648
      %v687 = vsel %vm685, %v686, %v684
      %v688 = vadd.f32 %v582, 1e-05
      %v689 = vadd.f32 %v589, 1e-05
      %v690 = vadd.f32 %v596, 1e-05
      %v691 = vadd.f32 %v603, 1e-05
      %v692 = vadd.f32 %v610, 1e-05
      %v693 = vadd.f32 %v617, 1e-05
      %v694 = vadd.f32 %v624, 1e-05
      %v695 = vadd.f32 %v631, 1e-05
      %v696 = vadd.f32 %v638, 1e-05
      %v697 = vadd.f32 %v645, 1e-05
      %v698 = vadd.f32 %v652, 1e-05
      %v699 = vadd.f32 %v659, 1e-05
      %v700 = vadd.f32 %v666, 1e-05
      %v701 = vadd.f32 %v673, 1e-05
      %v702 = vadd.f32 %v680, 1e-05
      %v703 = vadd.f32 %v687, 1e-05
      %v704 = vrcp.pop %v688
      %v705 = vmul.f32 %v496, %v704
      %v706 = vrcp.pop %v689
      %v707 = vmul.f32 %v497, %v706
      %v708 = vrcp.pop %v690
      %v709 = vmul.f32 %v498, %v708
      %v710 = vrcp.pop %v691
      %v711 = vmul.f32 %v499, %v710
      %v712 = vrcp.pop %v692
      %v713 = vmul.f32 %v500, %v712
      %v714 = vrcp.pop %v693
      %v715 = vmul.f32 %v501, %v714
      %v716 = vrcp.pop %v694
      %v717 = vmul.f32 %v502, %v716
      %v718 = vrcp.pop %v695
      %v719 = vmul.f32 %v503, %v718
      %v720 = vrcp.pop %v696
      %v721 = vmul.f32 %v504, %v720
      %v722 = vrcp.pop %v697
      %v723 = vmul.f32 %v505, %v722
      %v724 = vrcp.pop %v698
      %v725 = vmul.f32 %v506, %v724
      %v726 = vrcp.pop %v699
      %v727 = vmul.f32 %v507, %v726
      %v728 = vrcp.pop %v700
      %v729 = vmul.f32 %v508, %v728
      %v730 = vrcp.pop %v701
      %v731 = vmul.f32 %v509, %v730
      %v732 = vrcp.pop %v702
      %v733 = vmul.f32 %v510, %v732
      %v734 = vrcp.pop %v703
      %v735 = vmul.f32 %v511, %v734
      %v736 = vlaneseq
      %v737 = vshrl.u32 %v736, 7
      %v738 = vsub.s32 1, %v737
      %v739 = vrot.slane %v256, %v738
      %v740 = vmul.f32 %v739, %v705
      %v741 = vmul.f32 %v739, %v707
      %v742 = vmul.f32 %v739, %v709
      %v743 = vmul.f32 %v739, %v711
      %v744 = vmul.f32 %v739, %v713
      %v745 = vmul.f32 %v739, %v715
      %v746 = vmul.f32 %v739, %v717
      %v747 = vmul.f32 %v739, %v719
      %v748 = vmul.f32 %v739, %v721
      %v749 = vmul.f32 %v739, %v723
      %v750 = vmul.f32 %v739, %v725
      %v751 = vmul.f32 %v739, %v727
      %v752 = vmul.f32 %v739, %v729
      %v753 = vmul.f32 %v739, %v731
      %v754 = vmul.f32 %v739, %v733
      %v755 = vmul.f32 %v739, %v735
      %v756 = vlaneseq
      %v757 = vshrl.u32 %v756, 7
      %v758 = vsub.s32 2, %v757
      %v759 = vrot.slane %v256, %v758
      %v760 = vadd.f32 %v740, %v759
      %v761 = vadd.f32 %v741, %v759
      %v762 = vadd.f32 %v742, %v759
      %v763 = vadd.f32 %v743, %v759
      %v764 = vadd.f32 %v744, %v759
      %v765 = vadd.f32 %v745, %v759
      %v766 = vadd.f32 %v746, %v759
      %v767 = vadd.f32 %v747, %v759
      %v768 = vadd.f32 %v748, %v759
      %v769 = vadd.f32 %v749, %v759
      %v770 = vadd.f32 %v750, %v759
      %v771 = vadd.f32 %v751, %v759
      %v772 = vadd.f32 %v752, %v759
      %v773 = vadd.f32 %v753, %v759
      %v774 = vadd.f32 %v754, %v759
      %v775 = vadd.f32 %v755, %v759
      %v776 = vmax.f32 %v760, 0.0
      %v777 = vmax.f32 %v761, 0.0
      %v778 = vmax.f32 %v762, 0.0
      %v779 = vmax.f32 %v763, 0.0
      %v780 = vmax.f32 %v764, 0.0
      %v781 = vmax.f32 %v765, 0.0
      %v782 = vmax.f32 %v766, 0.0
      %v783 = vmax.f32 %v767, 0.0
      %v784 = vmax.f32 %v768, 0.0
      %v785 = vmax.f32 %v769, 0.0
      %v786 = vmax.f32 %v770, 0.0
      %v787 = vmax.f32 %v771, 0.0
      %v788 = vmax.f32 %v772, 0.0
      %v789 = vmax.f32 %v773, 0.0
      %v790 = vmax.f32 %v774, 0.0
      %v791 = vmax.f32 %v775, 0.0
      %v792 = vpack.c.bf16 %v777, %v776
      %v793 = vpack.c.bf16 %v779, %v778
      %v794 = vpack.c.bf16 %v781, %v780
      %v795 = vpack.c.bf16 %v783, %v782
      %v796 = vpack.c.bf16 %v785, %v784
      %v797 = vpack.c.bf16 %v787, %v786
      %v798 = vpack.c.bf16 %v789, %v788
      %v799 = vpack.c.bf16 %v791, %v790
      %v800 = vld [vmem:[%s2] sm:$0xf]
      %v801 = vld [vmem:[%s2 + $0x4] sm:$0xf]
      %v802 = vld [vmem:[%s2 + $0x8] sm:$0xf]
      %v803 = vld [vmem:[%s2 + $0xc] sm:$0xf]
      %v804 = vld [vmem:[%s2 + $0x10] sm:$0xf]
      %v805 = vld [vmem:[%s2 + $0x14] sm:$0xf]
      %v806 = vld [vmem:[%s2 + $0x18] sm:$0xf]
      %v807 = vld [vmem:[%s2 + $0x1c] sm:$0xf]
      %v808 = vld [vmem:[%s2 + $0x20] sm:$0xf]
      %v809 = vld [vmem:[%s2 + $0x24] sm:$0xf]
      %v810 = vld [vmem:[%s2 + $0x28] sm:$0xf]
      %v811 = vld [vmem:[%s2 + $0x2c] sm:$0xf]
      %v812 = vld [vmem:[%s2 + $0x30] sm:$0xf]
      %v813 = vld [vmem:[%s2 + $0x34] sm:$0xf]
      %v814 = vld [vmem:[%s2 + $0x38] sm:$0xf]
      %v815 = vld [vmem:[%s2 + $0x3c] sm:$0xf]
      %v816 = vlaneseq
      %v817 = vshrl.u32 %v816, 7
      %v818 = vsub.s32 3, %v817
      %v819 = vrot.slane %v256, %v818
      %v836 = vunpack.c.l.b16 %v800
      %v837 = vunpack.c.l.b16 %v801
      %v838 = vunpack.c.l.b16 %v802
      %v839 = vunpack.c.l.b16 %v803
      %v840 = vunpack.c.l.b16 %v804
      %v841 = vunpack.c.l.b16 %v805
      %v842 = vunpack.c.l.b16 %v806
      %v843 = vunpack.c.l.b16 %v807
      %v844 = vunpack.c.l.b16 %v808
      %v845 = vunpack.c.l.b16 %v809
      %v846 = vunpack.c.l.b16 %v810
      %v847 = vunpack.c.l.b16 %v811
      %v848 = vunpack.c.l.b16 %v812
      %v849 = vunpack.c.l.b16 %v813
      %v850 = vunpack.c.l.b16 %v814
      %v851 = vunpack.c.l.b16 %v815
      %v852 = vpack.c.b16 %v837, %v836
      %v853 = vpack.c.b16 %v839, %v838
      %v854 = vpack.c.b16 %v841, %v840
      %v855 = vpack.c.b16 %v843, %v842
      %v856 = vpack.c.b16 %v845, %v844
      %v857 = vpack.c.b16 %v847, %v846
      %v858 = vpack.c.b16 %v849, %v848
      %v859 = vpack.c.b16 %v851, %v850
      %868 = vmatprep.subr.bf16.mxu0 0
      %869 = vmatpush1.bf16.msra.mxu0 %v859
      %870 = vmatprep.subr.bf16.mxu0 0
      %871 = vmatpush1.bf16.msra.mxu0 %v858
      %872 = vmatprep.subr.bf16.mxu0 0
      %873 = vmatpush1.bf16.msra.mxu0 %v857
      %874 = vmatprep.subr.bf16.mxu0 0
      %875 = vmatpush1.bf16.msra.mxu0 %v856
      %876 = vmatprep.subr.bf16.mxu0 0
      %877 = vmatpush1.bf16.msra.mxu0 %v855
      %878 = vmatprep.subr.bf16.mxu0 0
      %879 = vmatpush1.bf16.msra.mxu0 %v854
      %880 = vmatprep.subr.bf16.mxu0 0
      %881 = vmatpush1.bf16.msra.mxu0 %v853
      %882 = vmatprep.subr.bf16.mxu0 0
      %883 = vmatpush1.bf16.msra.mxu0 %v852
      %884 = vmatprep.subr.bf16.mxu0 0
      %885 = vmatpush2.bf16.msra.mxu0 0
      %886 = vmatprep.subr.bf16.mxu0 0
      %887 = vmatpush2.bf16.msra.mxu0 0
      %888 = vmatprep.subr.bf16.mxu0 0
      %889 = vmatpush2.bf16.msra.mxu0 0
      %890 = vmatprep.subr.bf16.mxu0 0
      %891 = vmatpush2.bf16.msra.mxu0 0
      %892 = vmatprep.subr.bf16.mxu0 0
      %893 = vmatpush2.bf16.msra.mxu0 0
      %894 = vmatprep.subr.bf16.mxu0 0
      %895 = vmatpush2.bf16.msra.mxu0 0
      %896 = vmatprep.subr.bf16.mxu0 0
      %897 = vmatpush2.bf16.msra.mxu0 0
      %898 = vmatprep.subr.bf16.mxu0 0
      %899 = vmatpush2.bf16.msra.mxu0 0
      %900 = vmatprep.mubr.bf16.mxu0 0
      %901 = vmatmul.mubr.bf16.gmra.mxu0 %v792
      %v902 = vpop.f32.mrf.mxu0
      %v903 = vadd.f32 %v819, %v902
      %v904 = vpop.f32.mrf.mxu0
      %v905 = vpop.f32.mrf.mxu0
      %v906 = vadd.f32 %v819, %v905
      %v907 = vpop.f32.mrf.mxu0
      %908 = vmatprep.mubr.bf16.mxu0 0
      %909 = vmatmul.mubr.bf16.gmra.mxu0 %v793
      %v910 = vpop.f32.mrf.mxu0
      %v911 = vadd.f32 %v819, %v910
      %v912 = vpop.f32.mrf.mxu0
      %v913 = vpop.f32.mrf.mxu0
      %v914 = vadd.f32 %v819, %v913
      %v915 = vpop.f32.mrf.mxu0
      %916 = vmatprep.mubr.bf16.mxu0 0
      %917 = vmatmul.mubr.bf16.gmra.mxu0 %v794
      %v918 = vpop.f32.mrf.mxu0
      %v919 = vadd.f32 %v819, %v918
      %v920 = vpop.f32.mrf.mxu0
      %v921 = vpop.f32.mrf.mxu0
      %v922 = vadd.f32 %v819, %v921
      %v923 = vpop.f32.mrf.mxu0
      %924 = vmatprep.mubr.bf16.mxu0 0
      %925 = vmatmul.mubr.bf16.gmra.mxu0 %v795
      %v926 = vpop.f32.mrf.mxu0
      %v927 = vadd.f32 %v819, %v926
      %v928 = vpop.f32.mrf.mxu0
      %v929 = vpop.f32.mrf.mxu0
      %v930 = vadd.f32 %v819, %v929
      %v931 = vpop.f32.mrf.mxu0
      %932 = vmatprep.mubr.bf16.mxu0 0
      %933 = vmatmul.mubr.bf16.gmra.mxu0 %v796
      %v934 = vpop.f32.mrf.mxu0
      %v935 = vadd.f32 %v819, %v934
      %v936 = vpop.f32.mrf.mxu0
      %v937 = vpop.f32.mrf.mxu0
      %v938 = vadd.f32 %v819, %v937
      %v939 = vpop.f32.mrf.mxu0
      %940 = vmatprep.mubr.bf16.mxu0 0
      %941 = vmatmul.mubr.bf16.gmra.mxu0 %v797
      %v942 = vpop.f32.mrf.mxu0
      %v943 = vadd.f32 %v819, %v942
      %v944 = vpop.f32.mrf.mxu0
      %v945 = vpop.f32.mrf.mxu0
      %v946 = vadd.f32 %v819, %v945
      %v947 = vpop.f32.mrf.mxu0
      %948 = vmatprep.mubr.bf16.mxu0 0
      %949 = vmatmul.mubr.bf16.gmra.mxu0 %v798
      %v950 = vpop.f32.mrf.mxu0
      %v951 = vadd.f32 %v819, %v950
      %v952 = vpop.f32.mrf.mxu0
      %v953 = vpop.f32.mrf.mxu0
      %v954 = vadd.f32 %v819, %v953
      %v955 = vpop.f32.mrf.mxu0
      %956 = vmatprep.mubr.bf16.mxu0 0
      %957 = vmatmul.mubr.bf16.gmra.mxu0 %v799
      %v958 = vpop.f32.mrf.mxu0
      %v959 = vadd.f32 %v819, %v958
      %v960 = vpop.f32.mrf.mxu0
      %v961 = vpop.f32.mrf.mxu0
      %v962 = vadd.f32 %v819, %v961
      %v963 = vpop.f32.mrf.mxu0
      %964 = vdwg.mxu0
      %965 = vadd.xlane.f32.xlu0 %v903
      %v966 = vpop.xlane.xlu0 %965
      %967 = vadd.xlane.f32.xlu0 %v906
      %v968 = vpop.xlane.xlu0 %967
      %969 = vadd.xlane.f32.xlu0 %v911
      %v970 = vpop.xlane.xlu0 %969
      %971 = vadd.xlane.f32.xlu0 %v914
      %v972 = vpop.xlane.xlu0 %971
      %973 = vadd.xlane.f32.xlu0 %v919
      %v974 = vpop.xlane.xlu0 %973
      %975 = vadd.xlane.f32.xlu0 %v922
      %v976 = vpop.xlane.xlu0 %975
      %977 = vadd.xlane.f32.xlu0 %v927
      %v978 = vpop.xlane.xlu0 %977
      %979 = vadd.xlane.f32.xlu0 %v930
      %v980 = vpop.xlane.xlu0 %979
      %981 = vadd.xlane.f32.xlu0 %v935
      %v982 = vpop.xlane.xlu0 %981
      %983 = vadd.xlane.f32.xlu0 %v938
      %v984 = vpop.xlane.xlu0 %983
      %985 = vadd.xlane.f32.xlu0 %v943
      %v986 = vpop.xlane.xlu0 %985
      %987 = vadd.xlane.f32.xlu0 %v946
      %v988 = vpop.xlane.xlu0 %987
      %989 = vadd.xlane.f32.xlu0 %v951
      %v990 = vpop.xlane.xlu0 %989
      %991 = vadd.xlane.f32.xlu0 %v954
      %v992 = vpop.xlane.xlu0 %991
      %993 = vadd.xlane.f32.xlu0 %v959
      %v994 = vpop.xlane.xlu0 %993
      %995 = vadd.xlane.f32.xlu0 %v962
      %v996 = vpop.xlane.xlu0 %995
      %v997 = vmul.f32 %v966, %v479
      %v998 = vmul.f32 %v968, %v479
      %v999 = vmul.f32 %v970, %v479
      %v1000 = vmul.f32 %v972, %v479
      %v1001 = vmul.f32 %v974, %v479
      %v1002 = vmul.f32 %v976, %v479
      %v1003 = vmul.f32 %v978, %v479
      %v1004 = vmul.f32 %v980, %v479
      %v1005 = vmul.f32 %v982, %v479
      %v1006 = vmul.f32 %v984, %v479
      %v1007 = vmul.f32 %v986, %v479
      %v1008 = vmul.f32 %v988, %v479
      %v1009 = vmul.f32 %v990, %v479
      %v1010 = vmul.f32 %v992, %v479
      %v1011 = vmul.f32 %v994, %v479
      %v1012 = vmul.f32 %v996, %v479
      %v1013 = vsub.f32 %v903, %v997
      %v1014 = vsub.f32 %v906, %v998
      %v1015 = vsub.f32 %v911, %v999
      %v1016 = vsub.f32 %v914, %v1000
      %v1017 = vsub.f32 %v919, %v1001
      %v1018 = vsub.f32 %v922, %v1002
      %v1019 = vsub.f32 %v927, %v1003
      %v1020 = vsub.f32 %v930, %v1004
      %v1021 = vsub.f32 %v935, %v1005
      %v1022 = vsub.f32 %v938, %v1006
      %v1023 = vsub.f32 %v943, %v1007
      %v1024 = vsub.f32 %v946, %v1008
      %v1025 = vsub.f32 %v951, %v1009
      %v1026 = vsub.f32 %v954, %v1010
      %v1027 = vsub.f32 %v959, %v1011
      %v1028 = vsub.f32 %v962, %v1012
      %v1029 = vmul.f32 %v1013, %v1013
      %v1030 = vmul.f32 %v1014, %v1014
      %v1031 = vmul.f32 %v1015, %v1015
      %v1032 = vmul.f32 %v1016, %v1016
      %v1033 = vmul.f32 %v1017, %v1017
      %v1034 = vmul.f32 %v1018, %v1018
      %v1035 = vmul.f32 %v1019, %v1019
      %v1036 = vmul.f32 %v1020, %v1020
      %v1037 = vmul.f32 %v1021, %v1021
      %v1038 = vmul.f32 %v1022, %v1022
      %v1039 = vmul.f32 %v1023, %v1023
      %v1040 = vmul.f32 %v1024, %v1024
      %v1041 = vmul.f32 %v1025, %v1025
      %v1042 = vmul.f32 %v1026, %v1026
      %v1043 = vmul.f32 %v1027, %v1027
      %v1044 = vmul.f32 %v1028, %v1028
      %1045 = vadd.xlane.f32.xlu0 %v1029
      %v1046 = vpop.xlane.xlu0 %1045
      %1047 = vadd.xlane.f32.xlu0 %v1030
      %v1048 = vpop.xlane.xlu0 %1047
      %1049 = vadd.xlane.f32.xlu0 %v1031
      %v1050 = vpop.xlane.xlu0 %1049
      %1051 = vadd.xlane.f32.xlu0 %v1032
      %v1052 = vpop.xlane.xlu0 %1051
      %1053 = vadd.xlane.f32.xlu0 %v1033
      %v1054 = vpop.xlane.xlu0 %1053
      %1055 = vadd.xlane.f32.xlu0 %v1034
      %v1056 = vpop.xlane.xlu0 %1055
      %1057 = vadd.xlane.f32.xlu0 %v1035
      %v1058 = vpop.xlane.xlu0 %1057
      %1059 = vadd.xlane.f32.xlu0 %v1036
      %v1060 = vpop.xlane.xlu0 %1059
      %1061 = vadd.xlane.f32.xlu0 %v1037
      %v1062 = vpop.xlane.xlu0 %1061
      %1063 = vadd.xlane.f32.xlu0 %v1038
      %v1064 = vpop.xlane.xlu0 %1063
      %1065 = vadd.xlane.f32.xlu0 %v1039
      %v1066 = vpop.xlane.xlu0 %1065
      %1067 = vadd.xlane.f32.xlu0 %v1040
      %v1068 = vpop.xlane.xlu0 %1067
      %1069 = vadd.xlane.f32.xlu0 %v1041
      %v1070 = vpop.xlane.xlu0 %1069
      %1071 = vadd.xlane.f32.xlu0 %v1042
      %v1072 = vpop.xlane.xlu0 %1071
      %1073 = vadd.xlane.f32.xlu0 %v1043
      %v1074 = vpop.xlane.xlu0 %1073
      %1075 = vadd.xlane.f32.xlu0 %v1044
      %v1076 = vpop.xlane.xlu0 %1075
      %v1077 = vmul.f32 %v1046, 0.007874016
      %v1078 = vmul.f32 %v1048, 0.007874016
      %v1079 = vmul.f32 %v1050, 0.007874016
      %v1080 = vmul.f32 %v1052, 0.007874016
      %v1081 = vmul.f32 %v1054, 0.007874016
      %v1082 = vmul.f32 %v1056, 0.007874016
      %v1083 = vmul.f32 %v1058, 0.007874016
      %v1084 = vmul.f32 %v1060, 0.007874016
      %v1085 = vmul.f32 %v1062, 0.007874016
      %v1086 = vmul.f32 %v1064, 0.007874016
      %v1087 = vmul.f32 %v1066, 0.007874016
      %v1088 = vmul.f32 %v1068, 0.007874016
      %v1089 = vmul.f32 %v1070, 0.007874016
      %v1090 = vmul.f32 %v1072, 0.007874016
      %v1091 = vmul.f32 %v1074, 0.007874016
      %v1092 = vmul.f32 %v1076, 0.007874016
      %v1093 = vrsqrt.pop %v1077
      %v1094 = vmul.f32 %v1077, %v1093
      %vm1095 = vcmp.eq.f32.partialorder %v1077, inf
      %v1096 = vsel %vm1095, %v1077, %v1094
      %vm1097 = vcmp.eq.f32.partialorder %v1077, 0.0
      %v1098 = vand.u32 %v1077, 2147483648
      %v1099 = vsel %vm1097, %v1098, %v1096
      %v1100 = vrsqrt.pop %v1078
      %v1101 = vmul.f32 %v1078, %v1100
      %vm1102 = vcmp.eq.f32.partialorder %v1078, inf
      %v1103 = vsel %vm1102, %v1078, %v1101
      %vm1104 = vcmp.eq.f32.partialorder %v1078, 0.0
      %v1105 = vand.u32 %v1078, 2147483648
      %v1106 = vsel %vm1104, %v1105, %v1103
      %v1107 = vrsqrt.pop %v1079
      %v1108 = vmul.f32 %v1079, %v1107
      %vm1109 = vcmp.eq.f32.partialorder %v1079, inf
      %v1110 = vsel %vm1109, %v1079, %v1108
      %vm1111 = vcmp.eq.f32.partialorder %v1079, 0.0
      %v1112 = vand.u32 %v1079, 2147483648
      %v1113 = vsel %vm1111, %v1112, %v1110
      %v1114 = vrsqrt.pop %v1080
      %v1115 = vmul.f32 %v1080, %v1114
      %vm1116 = vcmp.eq.f32.partialorder %v1080, inf
      %v1117 = vsel %vm1116, %v1080, %v1115
      %vm1118 = vcmp.eq.f32.partialorder %v1080, 0.0
      %v1119 = vand.u32 %v1080, 2147483648
      %v1120 = vsel %vm1118, %v1119, %v1117
      %v1121 = vrsqrt.pop %v1081
      %v1122 = vmul.f32 %v1081, %v1121
      %vm1123 = vcmp.eq.f32.partialorder %v1081, inf
      %v1124 = vsel %vm1123, %v1081, %v1122
      %vm1125 = vcmp.eq.f32.partialorder %v1081, 0.0
      %v1126 = vand.u32 %v1081, 2147483648
      %v1127 = vsel %vm1125, %v1126, %v1124
      %v1128 = vrsqrt.pop %v1082
      %v1129 = vmul.f32 %v1082, %v1128
      %vm1130 = vcmp.eq.f32.partialorder %v1082, inf
      %v1131 = vsel %vm1130, %v1082, %v1129
      %vm1132 = vcmp.eq.f32.partialorder %v1082, 0.0
      %v1133 = vand.u32 %v1082, 2147483648
      %v1134 = vsel %vm1132, %v1133, %v1131
      %v1135 = vrsqrt.pop %v1083
      %v1136 = vmul.f32 %v1083, %v1135
      %vm1137 = vcmp.eq.f32.partialorder %v1083, inf
      %v1138 = vsel %vm1137, %v1083, %v1136
      %vm1139 = vcmp.eq.f32.partialorder %v1083, 0.0
      %v1140 = vand.u32 %v1083, 2147483648
      %v1141 = vsel %vm1139, %v1140, %v1138
      %v1142 = vrsqrt.pop %v1084
      %v1143 = vmul.f32 %v1084, %v1142
      %vm1144 = vcmp.eq.f32.partialorder %v1084, inf
      %v1145 = vsel %vm1144, %v1084, %v1143
      %vm1146 = vcmp.eq.f32.partialorder %v1084, 0.0
      %v1147 = vand.u32 %v1084, 2147483648
      %v1148 = vsel %vm1146, %v1147, %v1145
      %v1149 = vrsqrt.pop %v1085
      %v1150 = vmul.f32 %v1085, %v1149
      %vm1151 = vcmp.eq.f32.partialorder %v1085, inf
      %v1152 = vsel %vm1151, %v1085, %v1150
      %vm1153 = vcmp.eq.f32.partialorder %v1085, 0.0
      %v1154 = vand.u32 %v1085, 2147483648
      %v1155 = vsel %vm1153, %v1154, %v1152
      %v1156 = vrsqrt.pop %v1086
      %v1157 = vmul.f32 %v1086, %v1156
      %vm1158 = vcmp.eq.f32.partialorder %v1086, inf
      %v1159 = vsel %vm1158, %v1086, %v1157
      %vm1160 = vcmp.eq.f32.partialorder %v1086, 0.0
      %v1161 = vand.u32 %v1086, 2147483648
      %v1162 = vsel %vm1160, %v1161, %v1159
      %v1163 = vrsqrt.pop %v1087
      %v1164 = vmul.f32 %v1087, %v1163
      %vm1165 = vcmp.eq.f32.partialorder %v1087, inf
      %v1166 = vsel %vm1165, %v1087, %v1164
      %vm1167 = vcmp.eq.f32.partialorder %v1087, 0.0
      %v1168 = vand.u32 %v1087, 2147483648
      %v1169 = vsel %vm1167, %v1168, %v1166
      %v1170 = vrsqrt.pop %v1088
      %v1171 = vmul.f32 %v1088, %v1170
      %vm1172 = vcmp.eq.f32.partialorder %v1088, inf
      %v1173 = vsel %vm1172, %v1088, %v1171
      %vm1174 = vcmp.eq.f32.partialorder %v1088, 0.0
      %v1175 = vand.u32 %v1088, 2147483648
      %v1176 = vsel %vm1174, %v1175, %v1173
      %v1177 = vrsqrt.pop %v1089
      %v1178 = vmul.f32 %v1089, %v1177
      %vm1179 = vcmp.eq.f32.partialorder %v1089, inf
      %v1180 = vsel %vm1179, %v1089, %v1178
      %vm1181 = vcmp.eq.f32.partialorder %v1089, 0.0
      %v1182 = vand.u32 %v1089, 2147483648
      %v1183 = vsel %vm1181, %v1182, %v1180
      %v1184 = vrsqrt.pop %v1090
      %v1185 = vmul.f32 %v1090, %v1184
      %vm1186 = vcmp.eq.f32.partialorder %v1090, inf
      %v1187 = vsel %vm1186, %v1090, %v1185
      %vm1188 = vcmp.eq.f32.partialorder %v1090, 0.0
      %v1189 = vand.u32 %v1090, 2147483648
      %v1190 = vsel %vm1188, %v1189, %v1187
      %v1191 = vrsqrt.pop %v1091
      %v1192 = vmul.f32 %v1091, %v1191
      %vm1193 = vcmp.eq.f32.partialorder %v1091, inf
      %v1194 = vsel %vm1193, %v1091, %v1192
      %vm1195 = vcmp.eq.f32.partialorder %v1091, 0.0
      %v1196 = vand.u32 %v1091, 2147483648
      %v1197 = vsel %vm1195, %v1196, %v1194
      %v1198 = vrsqrt.pop %v1092
      %v1199 = vmul.f32 %v1092, %v1198
      %vm1200 = vcmp.eq.f32.partialorder %v1092, inf
      %v1201 = vsel %vm1200, %v1092, %v1199
      %vm1202 = vcmp.eq.f32.partialorder %v1092, 0.0
      %v1203 = vand.u32 %v1092, 2147483648
      %v1204 = vsel %vm1202, %v1203, %v1201
      %v1205 = vadd.f32 %v1099, 1e-05
      %v1206 = vadd.f32 %v1106, 1e-05
      %v1207 = vadd.f32 %v1113, 1e-05
      %v1208 = vadd.f32 %v1120, 1e-05
      %v1209 = vadd.f32 %v1127, 1e-05
      %v1210 = vadd.f32 %v1134, 1e-05
      %v1211 = vadd.f32 %v1141, 1e-05
      %v1212 = vadd.f32 %v1148, 1e-05
      %v1213 = vadd.f32 %v1155, 1e-05
      %v1214 = vadd.f32 %v1162, 1e-05
      %v1215 = vadd.f32 %v1169, 1e-05
      %v1216 = vadd.f32 %v1176, 1e-05
      %v1217 = vadd.f32 %v1183, 1e-05
      %v1218 = vadd.f32 %v1190, 1e-05
      %v1219 = vadd.f32 %v1197, 1e-05
      %v1220 = vadd.f32 %v1204, 1e-05
      %v1221 = vrcp.pop %v1205
      %v1222 = vmul.f32 %v1013, %v1221
      %v1223 = vrcp.pop %v1206
      %v1224 = vmul.f32 %v1014, %v1223
      %v1225 = vrcp.pop %v1207
      %v1226 = vmul.f32 %v1015, %v1225
      %v1227 = vrcp.pop %v1208
      %v1228 = vmul.f32 %v1016, %v1227
      %v1229 = vrcp.pop %v1209
      %v1230 = vmul.f32 %v1017, %v1229
      %v1231 = vrcp.pop %v1210
      %v1232 = vmul.f32 %v1018, %v1231
      %v1233 = vrcp.pop %v1211
      %v1234 = vmul.f32 %v1019, %v1233
      %v1235 = vrcp.pop %v1212
      %v1236 = vmul.f32 %v1020, %v1235
      %v1237 = vrcp.pop %v1213
      %v1238 = vmul.f32 %v1021, %v1237
      %v1239 = vrcp.pop %v1214
      %v1240 = vmul.f32 %v1022, %v1239
      %v1241 = vrcp.pop %v1215
      %v1242 = vmul.f32 %v1023, %v1241
      %v1243 = vrcp.pop %v1216
      %v1244 = vmul.f32 %v1024, %v1243
      %v1245 = vrcp.pop %v1217
      %v1246 = vmul.f32 %v1025, %v1245
      %v1247 = vrcp.pop %v1218
      %v1248 = vmul.f32 %v1026, %v1247
      %v1249 = vrcp.pop %v1219
      %v1250 = vmul.f32 %v1027, %v1249
      %v1251 = vrcp.pop %v1220
      %v1252 = vmul.f32 %v1028, %v1251
      %v1253 = vlaneseq
      %v1254 = vshrl.u32 %v1253, 7
      %v1255 = vsub.s32 4, %v1254
      %v1256 = vrot.slane %v256, %v1255
      %v1257 = vmul.f32 %v1256, %v1222
      %v1258 = vmul.f32 %v1256, %v1224
      %v1259 = vmul.f32 %v1256, %v1226
      %v1260 = vmul.f32 %v1256, %v1228
      %v1261 = vmul.f32 %v1256, %v1230
      %v1262 = vmul.f32 %v1256, %v1232
      %v1263 = vmul.f32 %v1256, %v1234
      %v1264 = vmul.f32 %v1256, %v1236
      %v1265 = vmul.f32 %v1256, %v1238
      %v1266 = vmul.f32 %v1256, %v1240
      %v1267 = vmul.f32 %v1256, %v1242
      %v1268 = vmul.f32 %v1256, %v1244
      %v1269 = vmul.f32 %v1256, %v1246
      %v1270 = vmul.f32 %v1256, %v1248
      %v1271 = vmul.f32 %v1256, %v1250
      %v1272 = vmul.f32 %v1256, %v1252
      %v1273 = vlaneseq
      %v1274 = vshrl.u32 %v1273, 7
      %v1275 = vsub.s32 5, %v1274
      %v1276 = vrot.slane %v256, %v1275
      %v1277 = vadd.f32 %v1257, %v1276
      %v1278 = vadd.f32 %v1258, %v1276
      %v1279 = vadd.f32 %v1259, %v1276
      %v1280 = vadd.f32 %v1260, %v1276
      %v1281 = vadd.f32 %v1261, %v1276
      %v1282 = vadd.f32 %v1262, %v1276
      %v1283 = vadd.f32 %v1263, %v1276
      %v1284 = vadd.f32 %v1264, %v1276
      %v1285 = vadd.f32 %v1265, %v1276
      %v1286 = vadd.f32 %v1266, %v1276
      %v1287 = vadd.f32 %v1267, %v1276
      %v1288 = vadd.f32 %v1268, %v1276
      %v1289 = vadd.f32 %v1269, %v1276
      %v1290 = vadd.f32 %v1270, %v1276
      %v1291 = vadd.f32 %v1271, %v1276
      %v1292 = vadd.f32 %v1272, %v1276
      %v1293 = vmax.f32 %v1277, 0.0
      %v1294 = vmax.f32 %v1278, 0.0
      %v1295 = vmax.f32 %v1279, 0.0
      %v1296 = vmax.f32 %v1280, 0.0
      %v1297 = vmax.f32 %v1281, 0.0
      %v1298 = vmax.f32 %v1282, 0.0
      %v1299 = vmax.f32 %v1283, 0.0
      %v1300 = vmax.f32 %v1284, 0.0
      %v1301 = vmax.f32 %v1285, 0.0
      %v1302 = vmax.f32 %v1286, 0.0
      %v1303 = vmax.f32 %v1287, 0.0
      %v1304 = vmax.f32 %v1288, 0.0
      %v1305 = vmax.f32 %v1289, 0.0
      %v1306 = vmax.f32 %v1290, 0.0
      %v1307 = vmax.f32 %v1291, 0.0
      %v1308 = vmax.f32 %v1292, 0.0
      %v1309 = vpack.c.bf16 %v1294, %v1293
      %v1310 = vpack.c.bf16 %v1296, %v1295
      %v1311 = vpack.c.bf16 %v1298, %v1297
      %v1312 = vpack.c.bf16 %v1300, %v1299
      %v1313 = vpack.c.bf16 %v1302, %v1301
      %v1314 = vpack.c.bf16 %v1304, %v1303
      %v1315 = vpack.c.bf16 %v1306, %v1305
      %v1316 = vpack.c.bf16 %v1308, %v1307
      %v1317 = vld [vmem:[%s3] sm:$0xf]
      %v1318 = vld [vmem:[%s3 + $0x4] sm:$0xf]
      %v1319 = vld [vmem:[%s3 + $0x8] sm:$0xf]
      %v1320 = vld [vmem:[%s3 + $0xc] sm:$0xf]
      %v1321 = vld [vmem:[%s3 + $0x10] sm:$0xf]
      %v1322 = vld [vmem:[%s3 + $0x14] sm:$0xf]
      %v1323 = vld [vmem:[%s3 + $0x18] sm:$0xf]
      %v1324 = vld [vmem:[%s3 + $0x1c] sm:$0xf]
      %v1325 = vld [vmem:[%s3 + $0x20] sm:$0xf]
      %v1326 = vld [vmem:[%s3 + $0x24] sm:$0xf]
      %v1327 = vld [vmem:[%s3 + $0x28] sm:$0xf]
      %v1328 = vld [vmem:[%s3 + $0x2c] sm:$0xf]
      %v1329 = vld [vmem:[%s3 + $0x30] sm:$0xf]
      %v1330 = vld [vmem:[%s3 + $0x34] sm:$0xf]
      %v1331 = vld [vmem:[%s3 + $0x38] sm:$0xf]
      %v1332 = vld [vmem:[%s3 + $0x3c] sm:$0xf]
      %v1333 = vld [vmem:[%s5] sm:$0x1]
      %v1335 = vlaneseq
      %v1336 = vshrl.u32 %v1335, 7
      %v1337 = vsub.s32 0, %v1336
      %v1338 = vrot.slane %v1333, %v1337
      %v1356 = vunpack.c.l.b16 %v1317
      %v1357 = vunpack.c.l.b16 %v1318
      %v1358 = vunpack.c.l.b16 %v1319
      %v1359 = vunpack.c.l.b16 %v1320
      %v1360 = vunpack.c.l.b16 %v1321
      %v1361 = vunpack.c.l.b16 %v1322
      %v1362 = vunpack.c.l.b16 %v1323
      %v1363 = vunpack.c.l.b16 %v1324
      %v1364 = vunpack.c.l.b16 %v1325
      %v1365 = vunpack.c.l.b16 %v1326
      %v1366 = vunpack.c.l.b16 %v1327
      %v1367 = vunpack.c.l.b16 %v1328
      %v1368 = vunpack.c.l.b16 %v1329
      %v1369 = vunpack.c.l.b16 %v1330
      %v1370 = vunpack.c.l.b16 %v1331
      %v1371 = vunpack.c.l.b16 %v1332
      %v1372 = vpack.c.b16 %v1357, %v1356
      %v1373 = vpack.c.b16 %v1359, %v1358
      %v1374 = vpack.c.b16 %v1361, %v1360
      %v1375 = vpack.c.b16 %v1363, %v1362
      %v1376 = vpack.c.b16 %v1365, %v1364
      %v1377 = vpack.c.b16 %v1367, %v1366
      %v1378 = vpack.c.b16 %v1369, %v1368
      %v1379 = vpack.c.b16 %v1371, %v1370
      %1388 = vmatprep.subr.bf16.mxu0 0
      %1389 = vmatpush1.bf16.msra.mxu0 %v1379
      %1390 = vmatprep.subr.bf16.mxu0 0
      %1391 = vmatpush1.bf16.msra.mxu0 %v1378
      %1392 = vmatprep.subr.bf16.mxu0 0
      %1393 = vmatpush1.bf16.msra.mxu0 %v1377
      %1394 = vmatprep.subr.bf16.mxu0 0
      %1395 = vmatpush1.bf16.msra.mxu0 %v1376
      %1396 = vmatprep.subr.bf16.mxu0 0
      %1397 = vmatpush1.bf16.msra.mxu0 %v1375
      %1398 = vmatprep.subr.bf16.mxu0 0
      %1399 = vmatpush1.bf16.msra.mxu0 %v1374
      %1400 = vmatprep.subr.bf16.mxu0 0
      %1401 = vmatpush1.bf16.msra.mxu0 %v1373
      %1402 = vmatprep.subr.bf16.mxu0 0
      %1403 = vmatpush1.bf16.msra.mxu0 %v1372
      %1404 = vmatprep.subr.bf16.mxu0 0
      %1405 = vmatpush2.bf16.msra.mxu0 0
      %1406 = vmatprep.subr.bf16.mxu0 0
      %1407 = vmatpush2.bf16.msra.mxu0 0
      %1408 = vmatprep.subr.bf16.mxu0 0
      %1409 = vmatpush2.bf16.msra.mxu0 0
      %1410 = vmatprep.subr.bf16.mxu0 0
      %1411 = vmatpush2.bf16.msra.mxu0 0
      %1412 = vmatprep.subr.bf16.mxu0 0
      %1413 = vmatpush2.bf16.msra.mxu0 0
      %1414 = vmatprep.subr.bf16.mxu0 0
      %1415 = vmatpush2.bf16.msra.mxu0 0
      %1416 = vmatprep.subr.bf16.mxu0 0
      %1417 = vmatpush2.bf16.msra.mxu0 0
      %1418 = vmatprep.subr.bf16.mxu0 0
      %1419 = vmatpush2.bf16.msra.mxu0 0
      %1420 = vmatprep.mubr.bf16.mxu0 0
      %1421 = vmatmul.mubr.bf16.gmra.mxu0 %v1309
      %v1422 = vpop.f32.mrf.mxu0
      %v1423 = vadd.f32 %v1338, %v1422
      %v1424 = vpop.f32.mrf.mxu0
      %v1425 = vpop.f32.mrf.mxu0
      %v1426 = vadd.f32 %v1338, %v1425
      %v1427 = vpop.f32.mrf.mxu0
      %1428 = vmatprep.mubr.bf16.mxu0 0
      %1429 = vmatmul.mubr.bf16.gmra.mxu0 %v1310
      %v1430 = vpop.f32.mrf.mxu0
      %v1431 = vadd.f32 %v1338, %v1430
      %v1432 = vpop.f32.mrf.mxu0
      %v1433 = vpop.f32.mrf.mxu0
      %v1434 = vadd.f32 %v1338, %v1433
      %v1435 = vpop.f32.mrf.mxu0
      %1436 = vmatprep.mubr.bf16.mxu0 0
      %1437 = vmatmul.mubr.bf16.gmra.mxu0 %v1311
      %v1438 = vpop.f32.mrf.mxu0
      %v1439 = vadd.f32 %v1338, %v1438
      %v1440 = vpop.f32.mrf.mxu0
      %v1441 = vpop.f32.mrf.mxu0
      %v1442 = vadd.f32 %v1338, %v1441
      %v1443 = vpop.f32.mrf.mxu0
      %1444 = vmatprep.mubr.bf16.mxu0 0
      %1445 = vmatmul.mubr.bf16.gmra.mxu0 %v1312
      %v1446 = vpop.f32.mrf.mxu0
      %v1447 = vadd.f32 %v1338, %v1446
      %v1448 = vpop.f32.mrf.mxu0
      %v1449 = vpop.f32.mrf.mxu0
      %v1450 = vadd.f32 %v1338, %v1449
      %v1451 = vpop.f32.mrf.mxu0
      %1452 = vmatprep.mubr.bf16.mxu0 0
      %1453 = vmatmul.mubr.bf16.gmra.mxu0 %v1313
      %v1454 = vpop.f32.mrf.mxu0
      %v1455 = vadd.f32 %v1338, %v1454
      %v1456 = vpop.f32.mrf.mxu0
      %v1457 = vpop.f32.mrf.mxu0
      %v1458 = vadd.f32 %v1338, %v1457
      %v1459 = vpop.f32.mrf.mxu0
      %1460 = vmatprep.mubr.bf16.mxu0 0
      %1461 = vmatmul.mubr.bf16.gmra.mxu0 %v1314
      %v1462 = vpop.f32.mrf.mxu0
      %v1463 = vadd.f32 %v1338, %v1462
      %v1464 = vpop.f32.mrf.mxu0
      %v1465 = vpop.f32.mrf.mxu0
      %v1466 = vadd.f32 %v1338, %v1465
      %v1467 = vpop.f32.mrf.mxu0
      %1468 = vmatprep.mubr.bf16.mxu0 0
      %1469 = vmatmul.mubr.bf16.gmra.mxu0 %v1315
      %v1470 = vpop.f32.mrf.mxu0
      %v1471 = vadd.f32 %v1338, %v1470
      %v1472 = vpop.f32.mrf.mxu0
      %v1473 = vpop.f32.mrf.mxu0
      %v1474 = vadd.f32 %v1338, %v1473
      %v1475 = vpop.f32.mrf.mxu0
      %1476 = vmatprep.mubr.bf16.mxu0 0
      %1477 = vmatmul.mubr.bf16.gmra.mxu0 %v1316
      %v1478 = vpop.f32.mrf.mxu0
      %v1479 = vadd.f32 %v1338, %v1478
      %v1480 = vpop.f32.mrf.mxu0
      %v1481 = vpop.f32.mrf.mxu0
      %v1482 = vadd.f32 %v1338, %v1481
      %v1483 = vpop.f32.mrf.mxu0
      %1484 = vdwg.mxu0
      %v1485 = vtanh.pop %v1423
      %v1486 = vtanh.pop %v1426
      %v1487 = vtanh.pop %v1431
      %v1488 = vtanh.pop %v1434
      %v1489 = vtanh.pop %v1439
      %v1490 = vtanh.pop %v1442
      %v1491 = vtanh.pop %v1447
      %v1492 = vtanh.pop %v1450
      %v1493 = vtanh.pop %v1455
      %v1494 = vtanh.pop %v1458
      %v1495 = vtanh.pop %v1463
      %v1496 = vtanh.pop %v1466
      %v1497 = vtanh.pop %v1471
      %v1498 = vtanh.pop %v1474
      %v1499 = vtanh.pop %v1479
      %v1500 = vtanh.pop %v1482
      %v1501 = vpack.c.bf16 %v1486, %v1485
      %v1502 = vpack.c.bf16 %v1488, %v1487
      %v1503 = vpack.c.bf16 %v1490, %v1489
      %v1504 = vpack.c.bf16 %v1492, %v1491
      %v1505 = vpack.c.bf16 %v1494, %v1493
      %v1506 = vpack.c.bf16 %v1496, %v1495
      %v1507 = vpack.c.bf16 %v1498, %v1497
      %v1508 = vpack.c.bf16 %v1500, %v1499
      %v1517 = vunpack.c.l.b16 %v1501
      %v1518 = vunpack.c.h.b16 %v1501
      %v1519 = vunpack.c.l.b16 %v1502
      %v1520 = vunpack.c.h.b16 %v1502
      %v1521 = vunpack.c.l.b16 %v1503
      %v1522 = vunpack.c.h.b16 %v1503
      %v1523 = vunpack.c.l.b16 %v1504
      %v1524 = vunpack.c.h.b16 %v1504
      %v1525 = vunpack.c.l.b16 %v1505
      %v1526 = vunpack.c.h.b16 %v1505
      %v1527 = vunpack.c.l.b16 %v1506
      %v1528 = vunpack.c.h.b16 %v1506
      %v1529 = vunpack.c.l.b16 %v1507
      %v1530 = vunpack.c.h.b16 %v1507
      %v1531 = vunpack.c.l.b16 %v1508
      %v1532 = vunpack.c.h.b16 %v1508
      %v1533 = vpack.c.b16 %v1517, %v1517
      %v1534 = vpack.c.b16 %v1518, %v1518
      %v1535 = vpack.c.b16 %v1519, %v1519
      %v1536 = vpack.c.b16 %v1520, %v1520
      %v1537 = vpack.c.b16 %v1521, %v1521
      %v1538 = vpack.c.b16 %v1522, %v1522
      %v1539 = vpack.c.b16 %v1523, %v1523
      %v1540 = vpack.c.b16 %v1524, %v1524
      %v1541 = vpack.c.b16 %v1525, %v1525
      %v1542 = vpack.c.b16 %v1526, %v1526
      %v1543 = vpack.c.b16 %v1527, %v1527
      %v1544 = vpack.c.b16 %v1528, %v1528
      %v1545 = vpack.c.b16 %v1529, %v1529
      %v1546 = vpack.c.b16 %v1530, %v1530
      %v1547 = vpack.c.b16 %v1531, %v1531
      %v1548 = vpack.c.b16 %v1532, %v1532
      %1565 = vst [vmem:[%s253] sm:$0xf] %v1533
      %1566 = vst [vmem:[%s253 + $0x4] sm:$0xf] %v1534
      %1567 = vst [vmem:[%s253 + $0x8] sm:$0xf] %v1535
      %1568 = vst [vmem:[%s253 + $0xc] sm:$0xf] %v1536
      %1569 = vst [vmem:[%s253 + $0x10] sm:$0xf] %v1537
      %1570 = vst [vmem:[%s253 + $0x14] sm:$0xf] %v1538
      %1571 = vst [vmem:[%s253 + $0x18] sm:$0xf] %v1539
      %1572 = vst [vmem:[%s253 + $0x1c] sm:$0xf] %v1540
      %1573 = vst [vmem:[%s253 + $0x20] sm:$0xf] %v1541
      %1574 = vst [vmem:[%s253 + $0x24] sm:$0xf] %v1542
      %1575 = vst [vmem:[%s253 + $0x28] sm:$0xf] %v1543
      %1576 = vst [vmem:[%s253 + $0x2c] sm:$0xf] %v1544
      %1577 = vst [vmem:[%s253 + $0x30] sm:$0xf] %v1545
      %1578 = vst [vmem:[%s253 + $0x34] sm:$0xf] %v1546
      %1579 = vst [vmem:[%s253 + $0x38] sm:$0xf] %v1547
      %1580 = vst [vmem:[%s253 + $0x3c] sm:$0xf] %v1548
      %s1581 = smul.u32 16, %s17
      %p1582 = scmp.lt.s32.totalorder %s1581, 31
      %s1583 = scalar_select %p1582, %s1581, 31
      %s1584 = smul.addr %s1583, 4
      %s1585 = scalar_lea.vmem %s6, %s1584
      // Predicated region
      $region45: #{ddpg_actor_forward.1} parent=43 // pred_check
        %p1586 = pneg %p166
      $region46: #{ddpg_actor_forward.1} parent=43 // pred_check_branch
        %1588 = sbr.rel (%p1586) target = $region48
      $region47: #{ddpg_actor_forward.1} parent=43 // pred_region
        %s1589 = smul.u32 16, %s17
      $region48: #{ddpg_actor_forward.1} parent=43 // pred_fallthru
        _
    $region44: #{ddpg_actor_forward.1} parent=5 // pred_fallthru
      _
    %p1590 = scmp.le.s32.totalorder 2, %s12
    // Predicated region
    $region49: #{ddpg_actor_forward.1} parent=5 // pred_check
      %p1591 = pneg %p1590
    $region50: #{ddpg_actor_forward.1} parent=5 // pred_check_branch
      %1593 = sbr.rel (%p1591) target = $region52
    $region51: #{ddpg_actor_forward.1} parent=5 // pred_region
      %s1594 = ssub.s32 %s12, 2
      // Predicated region
      $region53: #{ddpg_actor_forward.1} parent=51 // pred_check
        %p1595 = pneg %p172
      $region54: #{ddpg_actor_forward.1} parent=51 // pred_check_branch
        %1597 = sbr.rel (%p1595) target = $region56
      $region55: #{ddpg_actor_forward.1} parent=51 // pred_region
        %s1598 = smul.u32 16, %s18
        %p1599 = scmp.lt.s32.totalorder %s1598, 31
        %s1600 = scalar_select %p1599, %s1598, 31
        %s1601 = smul.addr %s1600, 4
        %s1602 = scalar_lea.vmem %s6, %s1601
      $region56: #{ddpg_actor_forward.1} parent=51 // pred_fallthru
        _
    $region52: #{ddpg_actor_forward.1} parent=5 // pred_fallthru
      _
  $region6: #{ddpg_actor_forward.1} parent=0 // loop_footer
    %s16 = sadd.s32 1, %s12
  $region7: #{ddpg_actor_forward.1} parent=0 // loop_footer_branch
    %11 = sbr.rel target = $region3
  $region8: #{ddpg_actor_forward.1} parent=0 // loop_exit
    _

</llo_original>
